<compile_context>
chip_gen: v7x
topology: tpu7x:2x2x1
jax: 0.10.0
libtpu: 0.0.40
codegen_flags: <defaults>
</compile_context>

<pallas_src>
import functools
import math

import jax
import jax.numpy as jnp
from jax import lax
from jax.experimental import pallas as pl
from jax.experimental.pallas import tpu as pltpu


def _layernorm(x, g, b, eps=1e-5):
    """x: (T, C) f32, g/b: (1, C) f32.  Matches torch.nn.LayerNorm (biased var)."""
    mu = jnp.mean(x, axis=-1, keepdims=True)
    var = jnp.mean((x - mu) ** 2, axis=-1, keepdims=True)
    return (x - mu) * lax.rsqrt(var + eps) * g + b


def blocks_kernel(x_ref, ln1g_ref, ln1b_ref, wqkv_ref, wproj_ref, bproj_ref,
                  ln2g_ref, ln2b_ref, w1_ref, b1_ref, w2_ref, b2_ref,
                  lnfg_ref, lnfb_ref, xn_ref, resid_ref, *, n_head):
    """One transformer Block per grid step; grid = (batch, layer).

    The f32 residual stream lives in `resid_ref` (VMEM scratch, resident across
    the inner layer axis).  The kernel output is the final-LayerNormed
    activation in bf16, written only on the last layer, consumed by lm_head.
    """
    layer = pl.program_id(1)
    n_layer = pl.num_programs(1)

    @pl.when(layer == 0)
    def _():
        resid_ref[...] = x_ref[0]

    x = resid_ref[...]                               # (T, C) f32
    T, C = x.shape
    hs = C // n_head
    bf16 = jnp.bfloat16

    # ---------------- self-attention on LN1(x) ----------------
    xln = _layernorm(x, ln1g_ref[0], ln1b_ref[0])
    # Fused QKV projection: one (T, C) @ (C, 3C) bf16 MXU matmul, f32 accum.
    # The 1/sqrt(head_size) scale is folded into the Q columns at init time.
    qkv = jnp.dot(xln.astype(bf16), wqkv_ref[0],
                  preferred_element_type=jnp.float32)          # (T, 3C) f32

    # Head-batched (H, T, hs) layout built from lane slices (avoids minor-dim
    # reshapes and per-head k.T transposes); attention = 2 batched MXU einsums.
    def split_heads(z):                               # (T, C) -> (H, T, hs)
        return jnp.stack([z[:, h * hs:(h + 1) * hs] for h in range(n_head)], 0)

    q = split_heads(qkv[:, 0 * C:1 * C]).astype(bf16)
    k = split_heads(qkv[:, 1 * C:2 * C]).astype(bf16)
    v = split_heads(qkv[:, 2 * C:3 * C]).astype(bf16)

    row = lax.broadcasted_iota(jnp.int32, (n_head, T, T), 1)
    col = lax.broadcasted_iota(jnp.int32, (n_head, T, T), 2)
    s = jnp.einsum('hqd,hkd->hqk', q, k,
                   preferred_element_type=jnp.float32)         # (H, T, T) f32
    s = jnp.where(col <= row, s, -jnp.inf)                     # causal mask
    s = s - jnp.max(s, axis=-1, keepdims=True)
    e = jnp.exp(s)
    p = e * pl.reciprocal(jnp.sum(e, axis=-1, keepdims=True), approx=True)
    o = jnp.einsum('hqk,hkd->hqd', p.astype(bf16), v,
                   preferred_element_type=jnp.float32)         # (H, T, hs) f32
    heads = jnp.concatenate([o[h] for h in range(n_head)], axis=-1)   # (T, C)

    sa = jnp.dot(heads.astype(bf16), wproj_ref[0],
                 preferred_element_type=jnp.float32) + bproj_ref[0]
    x = x + sa

    # ---------------- feed-forward on LN2(x) ----------------
    xln2 = _layernorm(x, ln2g_ref[0], ln2b_ref[0])
    h1 = jnp.dot(xln2.astype(bf16), w1_ref[0],
                 preferred_element_type=jnp.float32) + b1_ref[0]
    h1 = jnp.maximum(h1, 0.0)                        # ReLU
    ff = jnp.dot(h1.astype(bf16), w2_ref[0],
                 preferred_element_type=jnp.float32) + b2_ref[0]
    x = x + ff
    resid_ref[...] = x

    # Final LayerNorm fused into the last layer's epilogue, emitted in bf16 so
    # the lm_head streams half the activation bytes and never recomputes LN.
    @pl.when(layer == n_layer - 1)
    def _():
        xn_ref[0] = _layernorm(x, lnfg_ref[...], lnfb_ref[...]).astype(xn_ref.dtype)


def lm_head_kernel(xn_ref, wh_ref, bh_ref, out_ref):
    out_ref[0] = (jnp.dot(xn_ref[0], wh_ref[...],
                          preferred_element_type=jnp.float32)
                  + bh_ref[...]).astype(out_ref.dtype)


_LAYER_WEIGHTS = ('ln1_g', 'ln1_b', 'wqkv', 'wproj', 'bproj',
                  'ln2_g', 'ln2_b', 'w1', 'b1', 'w2', 'b2')


def run_blocks(x, blocks, ln_f_g, ln_f_b, n_head, *,
               vmem_limit_bytes=32 * 1024 * 1024):
    """All n_layer blocks + final LayerNorm in one pallas_call, grid=(B, L)."""
    B, T, C = x.shape
    L = blocks['wqkv'].shape[0]

    x_spec = pl.BlockSpec((1, T, C), lambda b, l: (b, 0, 0))
    w_specs = [pl.BlockSpec((1,) + blocks[n].shape[1:], lambda b, l: (l, 0, 0))
               for n in _LAYER_WEIGHTS]
    lnf_spec = pl.BlockSpec(ln_f_g.shape, lambda b, l: (0, 0))
    xn_spec = pl.BlockSpec((1, T, C), lambda b, l: (b, 0, 0))

    return pl.pallas_call(
        functools.partial(blocks_kernel, n_head=n_head),
        out_shape=jax.ShapeDtypeStruct((B, T, C), jnp.bfloat16),
        grid=(B, L),
        in_specs=[x_spec] + w_specs + [lnf_spec, lnf_spec],
        out_specs=xn_spec,
        scratch_shapes=[pltpu.VMEM((T, C), jnp.float32)],
        compiler_params=pltpu.CompilerParams(
            dimension_semantics=("parallel", "arbitrary"),
            vmem_limit_bytes=vmem_limit_bytes),
    )(x, *(blocks[n] for n in _LAYER_WEIGHTS), ln_f_g, ln_f_b)


def _round_up(x, m):
    return (x + m - 1) // m * m


def run_lm_head(xn, wh, bh, *, tile_v=2048, logits_dtype=jnp.float32,
                vmem_limit_bytes=32 * 1024 * 1024):
    """Vocab-tiled lm_head.  grid = (V_tiles, B), B innermost, so each
    (C, tile_v) weight tile is streamed from HBM exactly once (not B times).
    On v6e/v5e (128 MiB VMEM) tile_v / vmem_limit_bytes can be raised."""
    B, T, C = xn.shape
    V = wh.shape[1]
    tv = min(tile_v, _round_up(V, 128))
    Vp = _round_up(V, tv)
    if Vp != V:                                      # pad vocab; slice off below
        wh = jnp.pad(wh, ((0, 0), (0, Vp - V)))
        bh = jnp.pad(bh, ((0, 0), (0, Vp - V)))

    logits = pl.pallas_call(
        lm_head_kernel,
        out_shape=jax.ShapeDtypeStruct((B, T, Vp), logits_dtype),
        grid=(Vp // tv, B),
        in_specs=[pl.BlockSpec((1, T, C), lambda v, b: (b, 0, 0)),
                  pl.BlockSpec((C, tv), lambda v, b: (0, v)),
                  pl.BlockSpec((1, tv), lambda v, b: (0, v))],
        out_specs=pl.BlockSpec((1, T, tv), lambda v, b: (b, 0, v)),
        compiler_params=pltpu.CompilerParams(
            dimension_semantics=("parallel", "arbitrary"),
            vmem_limit_bytes=vmem_limit_bytes),
    )(xn, wh, bh)
    return logits[..., :V] if Vp != V else logits


def transformer_forward(idx, params, n_head):
    # Embedding gathers + broadcast add stay in plain JAX (XLA gather).
    B, T = idx.shape
    x = params['tok_emb'][idx] + params['pos_emb'][:T][None, :, :]   # (B, T, C)
    xn = run_blocks(x, params['blocks'], params['ln_f_g'], params['ln_f_b'],
                    n_head)
    logits = run_lm_head(xn, params['lm_w'], params['lm_b'])
    # TODO(synk): cross-entropy loss (targets != None) and multinomial
    #   `generate` sampling are not implemented; inference logits path only.
    return logits, None


def init_params(key, vocab_size, n_embd, n_head, n_layer, block_size):
    ktok, kpos, kq, kk, kv, kp, k1, k2, klm = jax.random.split(key, 9)

    def nrm(k, shape, scale=0.02):
        return scale * jax.random.normal(k, shape, dtype=jnp.float32)

    bf = jnp.bfloat16
    C = n_embd
    hs = C // n_head
    qscale = 1.0 / math.sqrt(hs)

    # 1/sqrt(head_size) folded into the Q columns of the fused QKV weight.
    wq = nrm(kq, (n_layer, C, C)) * qscale
    wk = nrm(kk, (n_layer, C, C))
    wv = nrm(kv, (n_layer, C, C))

    blocks = {
        'ln1_g': jnp.ones((n_layer, 1, C), jnp.float32),
        'ln1_b': jnp.zeros((n_layer, 1, C), jnp.float32),
        'wqkv': jnp.concatenate([wq, wk, wv], axis=-1).astype(bf),   # (L, C, 3C)
        'wproj': nrm(kp, (n_layer, C, C)).astype(bf),
        'bproj': jnp.zeros((n_layer, 1, C), jnp.float32),
        'ln2_g': jnp.ones((n_layer, 1, C), jnp.float32),
        'ln2_b': jnp.zeros((n_layer, 1, C), jnp.float32),
        'w1': nrm(k1, (n_layer, C, 4 * C)).astype(bf),
        'b1': jnp.zeros((n_layer, 1, 4 * C), jnp.float32),
        'w2': nrm(k2, (n_layer, 4 * C, C)).astype(bf),
        'b2': jnp.zeros((n_layer, 1, C), jnp.float32),
    }
    return {
        'tok_emb': nrm(ktok, (vocab_size, C)),
        'pos_emb': nrm(kpos, (block_size, C)),
        'blocks': blocks,
        'ln_f_g': jnp.ones((1, C), jnp.float32),
        'ln_f_b': jnp.zeros((1, C), jnp.float32),
        'lm_w': nrm(klm, (C, vocab_size)).astype(bf),
        'lm_b': jnp.zeros((1, vocab_size), jnp.float32),
    }


if __name__ == "__main__":
    vocab_size, n_embd, n_head, n_layer, block_size = 128, 32, 4, 2, 8
    B, T = 2, 8

    key = jax.random.PRNGKey(0)
    pkey, ikey = jax.random.split(key)
    params = init_params(pkey, vocab_size, n_embd, n_head, n_layer, block_size)
    idx = jax.random.randint(ikey, (B, T), 0, vocab_size, dtype=jnp.int32)

    fwd = jax.jit(functools.partial(transformer_forward, n_head=n_head))
    logits, loss = fwd(idx, params)
    logits = jax.block_until_ready(logits)

    assert logits.shape == (B, T, vocab_size), logits.shape
    assert logits.dtype == jnp.float32
    assert bool(jnp.all(jnp.isfinite(logits)))
    print("KERNEL_OK")
</pallas_src>

<mosaic_0001>
module attributes {stable_mosaic.version = 11 : i64} {
  func.func @blocks_kernel(%arg0: i32, %arg1: i32, %arg2: memref<1x8x32xf32, #tpu.memory_space<vmem>>, %arg3: memref<1x1x32xf32, #tpu.memory_space<vmem>>, %arg4: memref<1x1x32xf32, #tpu.memory_space<vmem>>, %arg5: memref<1x32x96xbf16, #tpu.memory_space<vmem>>, %arg6: memref<1x32x32xbf16, #tpu.memory_space<vmem>>, %arg7: memref<1x1x32xf32, #tpu.memory_space<vmem>>, %arg8: memref<1x1x32xf32, #tpu.memory_space<vmem>>, %arg9: memref<1x1x32xf32, #tpu.memory_space<vmem>>, %arg10: memref<1x32x128xbf16, #tpu.memory_space<vmem>>, %arg11: memref<1x1x128xf32, #tpu.memory_space<vmem>>, %arg12: memref<1x128x32xbf16, #tpu.memory_space<vmem>>, %arg13: memref<1x1x32xf32, #tpu.memory_space<vmem>>, %arg14: memref<1x32xf32, #tpu.memory_space<vmem>>, %arg15: memref<1x32xf32, #tpu.memory_space<vmem>>, %arg16: memref<1x8x32xbf16, #tpu.memory_space<vmem>>, %arg17: memref<8x32xf32, #tpu.memory_space<vmem>>) attributes {dimension_semantics = [#tpu.dimension_semantics<parallel>, #tpu.dimension_semantics<arbitrary>], iteration_bounds = array<i64: 2, 2>, scalar_prefetch = 0 : i64, scratch_operands = 1 : i64, tpu.core_type = #tpu.core_type<tc>, window_params = [{transform_indices = @transform_0, window_bounds = array<i64: 1, 8, 32>}, {transform_indices = @transform_1, window_bounds = array<i64: 1, 1, 32>}, {transform_indices = @transform_2, window_bounds = array<i64: 1, 1, 32>}, {transform_indices = @transform_3, window_bounds = array<i64: 1, 32, 96>}, {transform_indices = @transform_4, window_bounds = array<i64: 1, 32, 32>}, {transform_indices = @transform_5, window_bounds = array<i64: 1, 1, 32>}, {transform_indices = @transform_6, window_bounds = array<i64: 1, 1, 32>}, {transform_indices = @transform_7, window_bounds = array<i64: 1, 1, 32>}, {transform_indices = @transform_8, window_bounds = array<i64: 1, 32, 128>}, {transform_indices = @transform_9, window_bounds = array<i64: 1, 1, 128>}, {transform_indices = @transform_10, window_bounds = array<i64: 1, 128, 32>}, {transform_indices = @transform_11, window_bounds = array<i64: 1, 1, 32>}, {pipeline_mode = #tpu.pipeline_mode<synchronous>, transform_indices = @transform_12, window_bounds = array<i64: 1, 32>}, {pipeline_mode = #tpu.pipeline_mode<synchronous>, transform_indices = @transform_13, window_bounds = array<i64: 1, 32>}, {transform_indices = @transform_14, window_bounds = array<i64: 1, 8, 32>}]} {
    %c0_i32 = arith.constant 0 : i32
    %0 = arith.cmpi eq, %arg1, %c0_i32 : i32
    %1 = arith.extui %0 : i1 to i32
    %c0_i32_0 = arith.constant 0 : i32
    %2 = arith.cmpi ne, %1, %c0_i32_0 : i32
    scf.if %2 {
      %c0_57 = arith.constant 0 : index
      %c0_58 = arith.constant 0 : index
      %c0_59 = arith.constant 0 : index
      %152 = vector.load %arg2[%c0_57, %c0_58, %c0_59] : memref<1x8x32xf32, #tpu.memory_space<vmem>>, vector<1x8x32xf32>
      %153 = vector.shape_cast %152 : vector<1x8x32xf32> to vector<8x32xf32>
      %c0_60 = arith.constant 0 : index
      %c0_61 = arith.constant 0 : index
      %154 = vector.load %arg17[%c0_60, %c0_61] : memref<8x32xf32, #tpu.memory_space<vmem>>, vector<8x32xf32>
      tpu.vector_store %arg17[%c0_60, %c0_61], %153 {strides = array<i32>} : memref<8x32xf32, #tpu.memory_space<vmem>>, vector<8x32xf32>,
    } else {
    }
    %c0 = arith.constant 0 : index
    %c0_1 = arith.constant 0 : index
    %3 = vector.load %arg17[%c0, %c0_1] : memref<8x32xf32, #tpu.memory_space<vmem>>, vector<8x32xf32>
    %c0_2 = arith.constant 0 : index
    %c0_3 = arith.constant 0 : index
    %c0_4 = arith.constant 0 : index
    %4 = vector.load %arg3[%c0_2, %c0_3, %c0_4] : memref<1x1x32xf32, #tpu.memory_space<vmem>>, vector<1x1x32xf32>
    %5 = vector.shape_cast %4 : vector<1x1x32xf32> to vector<1x32xf32>
    %c0_5 = arith.constant 0 : index
    %c0_6 = arith.constant 0 : index
    %c0_7 = arith.constant 0 : index
    %6 = vector.load %arg4[%c0_5, %c0_6, %c0_7] : memref<1x1x32xf32, #tpu.memory_space<vmem>>, vector<1x1x32xf32>
    %7 = vector.shape_cast %6 : vector<1x1x32xf32> to vector<1x32xf32>
    %cst = arith.constant dense<0.000000e+00> : vector<8xf32>
    %8 = vector.multi_reduction <add>, %3, %cst [1] : vector<8x32xf32> to vector<8xf32>
    %9 = vector.shape_cast %8 : vector<8xf32> to vector<8x1xf32>
    %cst_8 = arith.constant 3.200000e+01 : f32
    %10 = vector.broadcast %cst_8 : f32 to vector<8x1xf32>
    %11 = arith.divf %9, %10 : vector<8x1xf32>
    %12 = vector.broadcast %11 : vector<8x1xf32> to vector<8x32xf32>
    %13 = arith.subf %3, %12 : vector<8x32xf32>
    %14 = arith.mulf %13, %13 : vector<8x32xf32>
    %cst_9 = arith.constant dense<0.000000e+00> : vector<8xf32>
    %15 = vector.multi_reduction <add>, %14, %cst_9 [1] : vector<8x32xf32> to vector<8xf32>
    %16 = vector.shape_cast %15 : vector<8xf32> to vector<8x1xf32>
    %cst_10 = arith.constant 3.200000e+01 : f32
    %17 = vector.broadcast %cst_10 : f32 to vector<8x1xf32>
    %18 = arith.divf %16, %17 : vector<8x1xf32>
    %19 = vector.broadcast %11 : vector<8x1xf32> to vector<8x32xf32>
    %20 = arith.subf %3, %19 : vector<8x32xf32>
    %cst_11 = arith.constant 9.99999974E-6 : f32
    %21 = vector.broadcast %cst_11 : f32 to vector<8x1xf32>
    %22 = arith.addf %18, %21 : vector<8x1xf32>
    %23 = math.rsqrt %22 : vector<8x1xf32>
    %24 = vector.broadcast %23 : vector<8x1xf32> to vector<8x32xf32>
    %25 = arith.mulf %20, %24 : vector<8x32xf32>
    %26 = vector.broadcast %5 : vector<1x32xf32> to vector<8x32xf32>
    %27 = arith.mulf %25, %26 : vector<8x32xf32>
    %28 = vector.broadcast %7 : vector<1x32xf32> to vector<8x32xf32>
    %29 = arith.addf %27, %28 : vector<8x32xf32>
    %30 = arith.truncf %29 : vector<8x32xf32> to vector<8x32xbf16>
    %c0_12 = arith.constant 0 : index
    %c0_13 = arith.constant 0 : index
    %c0_14 = arith.constant 0 : index
    %31 = vector.load %arg5[%c0_12, %c0_13, %c0_14] : memref<1x32x96xbf16, #tpu.memory_space<vmem>>, vector<1x32x96xbf16>
    %32 = vector.shape_cast %31 : vector<1x32x96xbf16> to vector<32x96xbf16>
    %cst_15 = arith.constant dense<0.000000e+00> : vector<8x96xf32>
    %33 = tpu.matmul %30, %32, %cst_15 {dimension_numbers = #tpu.dot_dimension_numbers<[1], [0], [0], [1], [0, 0, 1, 1], [], []>} : vector<8x32xbf16>, vector<32x96xbf16>, vector<8x96xf32> -> vector<8x96xf32>
    %34 = vector.extract_strided_slice %33 {offsets = [0, 0], sizes = [8, 32], strides = [1, 1]} : vector<8x96xf32> to vector<8x32xf32>
    %35 = vector.extract_strided_slice %34 {offsets = [0, 0], sizes = [8, 8], strides = [1, 1]} : vector<8x32xf32> to vector<8x8xf32>
    %36 = vector.extract_strided_slice %34 {offsets = [0, 8], sizes = [8, 8], strides = [1, 1]} : vector<8x32xf32> to vector<8x8xf32>
    %37 = vector.extract_strided_slice %34 {offsets = [0, 16], sizes = [8, 8], strides = [1, 1]} : vector<8x32xf32> to vector<8x8xf32>
    %38 = vector.extract_strided_slice %34 {offsets = [0, 24], sizes = [8, 8], strides = [1, 1]} : vector<8x32xf32> to vector<8x8xf32>
    %39 = vector.shape_cast %35 : vector<8x8xf32> to vector<1x8x8xf32>
    %40 = vector.shape_cast %36 : vector<8x8xf32> to vector<1x8x8xf32>
    %41 = vector.shape_cast %37 : vector<8x8xf32> to vector<1x8x8xf32>
    %42 = vector.shape_cast %38 : vector<8x8xf32> to vector<1x8x8xf32>
    %43 = tpu.concatenate %39, %40, %41, %42 in 0 : vector<1x8x8xf32>, vector<1x8x8xf32>, vector<1x8x8xf32>, vector<1x8x8xf32> -> vector<4x8x8xf32>
    %44 = arith.truncf %43 : vector<4x8x8xf32> to vector<4x8x8xbf16>
    %45 = vector.extract_strided_slice %33 {offsets = [0, 32], sizes = [8, 32], strides = [1, 1]} : vector<8x96xf32> to vector<8x32xf32>
    %46 = vector.extract_strided_slice %45 {offsets = [0, 0], sizes = [8, 8], strides = [1, 1]} : vector<8x32xf32> to vector<8x8xf32>
    %47 = vector.extract_strided_slice %45 {offsets = [0, 8], sizes = [8, 8], strides = [1, 1]} : vector<8x32xf32> to vector<8x8xf32>
    %48 = vector.extract_strided_slice %45 {offsets = [0, 16], sizes = [8, 8], strides = [1, 1]} : vector<8x32xf32> to vector<8x8xf32>
    %49 = vector.extract_strided_slice %45 {offsets = [0, 24], sizes = [8, 8], strides = [1, 1]} : vector<8x32xf32> to vector<8x8xf32>
    %50 = vector.shape_cast %46 : vector<8x8xf32> to vector<1x8x8xf32>
    %51 = vector.shape_cast %47 : vector<8x8xf32> to vector<1x8x8xf32>
    %52 = vector.shape_cast %48 : vector<8x8xf32> to vector<1x8x8xf32>
    %53 = vector.shape_cast %49 : vector<8x8xf32> to vector<1x8x8xf32>
    %54 = tpu.concatenate %50, %51, %52, %53 in 0 : vector<1x8x8xf32>, vector<1x8x8xf32>, vector<1x8x8xf32>, vector<1x8x8xf32> -> vector<4x8x8xf32>
    %55 = arith.truncf %54 : vector<4x8x8xf32> to vector<4x8x8xbf16>
    %56 = vector.extract_strided_slice %33 {offsets = [0, 64], sizes = [8, 32], strides = [1, 1]} : vector<8x96xf32> to vector<8x32xf32>
    %57 = vector.extract_strided_slice %56 {offsets = [0, 0], sizes = [8, 8], strides = [1, 1]} : vector<8x32xf32> to vector<8x8xf32>
    %58 = vector.extract_strided_slice %56 {offsets = [0, 8], sizes = [8, 8], strides = [1, 1]} : vector<8x32xf32> to vector<8x8xf32>
    %59 = vector.extract_strided_slice %56 {offsets = [0, 16], sizes = [8, 8], strides = [1, 1]} : vector<8x32xf32> to vector<8x8xf32>
    %60 = vector.extract_strided_slice %56 {offsets = [0, 24], sizes = [8, 8], strides = [1, 1]} : vector<8x32xf32> to vector<8x8xf32>
    %61 = vector.shape_cast %57 : vector<8x8xf32> to vector<1x8x8xf32>
    %62 = vector.shape_cast %58 : vector<8x8xf32> to vector<1x8x8xf32>
    %63 = vector.shape_cast %59 : vector<8x8xf32> to vector<1x8x8xf32>
    %64 = vector.shape_cast %60 : vector<8x8xf32> to vector<1x8x8xf32>
    %65 = tpu.concatenate %61, %62, %63, %64 in 0 : vector<1x8x8xf32>, vector<1x8x8xf32>, vector<1x8x8xf32>, vector<1x8x8xf32> -> vector<4x8x8xf32>
    %66 = arith.truncf %65 : vector<4x8x8xf32> to vector<4x8x8xbf16>
    %67 = tpu.iota {dimensions = array<i32: 1>} : vector<4x8x8xi32>
    %68 = tpu.iota {dimensions = array<i32: 2>} : vector<4x8x8xi32>
    "tpu.trace_start"() <{level = 10 : i32, message = "hqd,hkd->hqk"}> : () -> ()
    %cst_16 = arith.constant dense<0.000000e+00> : vector<4x8x8xf32>
    %69 = tpu.matmul %44, %55, %cst_16 {dimension_numbers = #tpu.dot_dimension_numbers<[2], [2], [1], [1], [0, 0, 0, 1, 1, 1], [0], [0]>} : vector<4x8x8xbf16>, vector<4x8x8xbf16>, vector<4x8x8xf32> -> vector<4x8x8xf32>
    "tpu.trace_stop"() : () -> ()
    %70 = arith.cmpi sle, %68, %67 : vector<4x8x8xi32>
    %cst_17 = arith.constant 0xFF800000 : f32
    %71 = vector.broadcast %cst_17 : f32 to vector<4x8x8xf32>
    %72 = arith.select %70, %69, %71 : vector<4x8x8xi1>, vector<4x8x8xf32>
    %cst_18 = arith.constant dense<0xFF800000> : vector<4x8xf32>
    %73 = vector.multi_reduction <maximumf>, %72, %cst_18 [2] : vector<4x8x8xf32> to vector<4x8xf32>
    %74 = vector.shape_cast %73 : vector<4x8xf32> to vector<4x8x1xf32>
    %75 = vector.broadcast %74 : vector<4x8x1xf32> to vector<4x8x8xf32>
    %76 = arith.subf %72, %75 : vector<4x8x8xf32>
    %77 = math.exp %76 : vector<4x8x8xf32>
    %cst_19 = arith.constant dense<0.000000e+00> : vector<4x8xf32>
    %78 = vector.multi_reduction <add>, %77, %cst_19 [2] : vector<4x8x8xf32> to vector<4x8xf32>
    %79 = vector.shape_cast %78 : vector<4x8xf32> to vector<4x8x1xf32>
    %80 = tpu.reciprocal %79 {approx = true} : vector<4x8x1xf32> -> vector<4x8x1xf32>
    %81 = vector.broadcast %80 : vector<4x8x1xf32> to vector<4x8x8xf32>
    %82 = arith.mulf %77, %81 : vector<4x8x8xf32>
    %83 = arith.truncf %82 : vector<4x8x8xf32> to vector<4x8x8xbf16>
    "tpu.trace_start"() <{level = 10 : i32, message = "hqk,hkd->hqd"}> : () -> ()
    %cst_20 = arith.constant dense<0.000000e+00> : vector<4x8x8xf32>
    %84 = tpu.matmul %83, %66, %cst_20 {dimension_numbers = #tpu.dot_dimension_numbers<[2], [1], [1], [2], [0, 0, 0, 1, 1, 2], [0], [0]>} : vector<4x8x8xbf16>, vector<4x8x8xbf16>, vector<4x8x8xf32> -> vector<4x8x8xf32>
    "tpu.trace_stop"() : () -> ()
    %85 = vector.extract_strided_slice %84 {offsets = [0, 0, 0], sizes = [1, 8, 8], strides = [1, 1, 1]} : vector<4x8x8xf32> to vector<1x8x8xf32>
    %86 = vector.shape_cast %85 : vector<1x8x8xf32> to vector<8x8xf32>
    %87 = vector.extract_strided_slice %84 {offsets = [1, 0, 0], sizes = [1, 8, 8], strides = [1, 1, 1]} : vector<4x8x8xf32> to vector<1x8x8xf32>
    %88 = vector.shape_cast %87 : vector<1x8x8xf32> to vector<8x8xf32>
    %89 = vector.extract_strided_slice %84 {offsets = [2, 0, 0], sizes = [1, 8, 8], strides = [1, 1, 1]} : vector<4x8x8xf32> to vector<1x8x8xf32>
    %90 = vector.shape_cast %89 : vector<1x8x8xf32> to vector<8x8xf32>
    %91 = vector.extract_strided_slice %84 {offsets = [3, 0, 0], sizes = [1, 8, 8], strides = [1, 1, 1]} : vector<4x8x8xf32> to vector<1x8x8xf32>
    %92 = vector.shape_cast %91 : vector<1x8x8xf32> to vector<8x8xf32>
    %93 = tpu.concatenate %86, %88, %90, %92 in 1 : vector<8x8xf32>, vector<8x8xf32>, vector<8x8xf32>, vector<8x8xf32> -> vector<8x32xf32>
    %94 = arith.truncf %93 : vector<8x32xf32> to vector<8x32xbf16>
    %c0_21 = arith.constant 0 : index
    %c0_22 = arith.constant 0 : index
    %c0_23 = arith.constant 0 : index
    %95 = vector.load %arg6[%c0_21, %c0_22, %c0_23] : memref<1x32x32xbf16, #tpu.memory_space<vmem>>, vector<1x32x32xbf16>
    %96 = vector.shape_cast %95 : vector<1x32x32xbf16> to vector<32x32xbf16>
    %cst_24 = arith.constant dense<0.000000e+00> : vector<8x32xf32>
    %97 = tpu.matmul %94, %96, %cst_24 {dimension_numbers = #tpu.dot_dimension_numbers<[1], [0], [0], [1], [0, 0, 1, 1], [], []>} : vector<8x32xbf16>, vector<32x32xbf16>, vector<8x32xf32> -> vector<8x32xf32>
    %c0_25 = arith.constant 0 : index
    %c0_26 = arith.constant 0 : index
    %c0_27 = arith.constant 0 : index
    %98 = vector.load %arg7[%c0_25, %c0_26, %c0_27] : memref<1x1x32xf32, #tpu.memory_space<vmem>>, vector<1x1x32xf32>
    %99 = vector.shape_cast %98 : vector<1x1x32xf32> to vector<1x32xf32>
    %100 = vector.broadcast %99 : vector<1x32xf32> to vector<8x32xf32>
    %101 = arith.addf %97, %100 : vector<8x32xf32>
    %102 = arith.addf %3, %101 : vector<8x32xf32>
    %c0_28 = arith.constant 0 : index
    %c0_29 = arith.constant 0 : index
    %c0_30 = arith.constant 0 : index
    %103 = vector.load %arg8[%c0_28, %c0_29, %c0_30] : memref<1x1x32xf32, #tpu.memory_space<vmem>>, vector<1x1x32xf32>
    %104 = vector.shape_cast %103 : vector<1x1x32xf32> to vector<1x32xf32>
    %c0_31 = arith.constant 0 : index
    %c0_32 = arith.constant 0 : index
    %c0_33 = arith.constant 0 : index
    %105 = vector.load %arg9[%c0_31, %c0_32, %c0_33] : memref<1x1x32xf32, #tpu.memory_space<vmem>>, vector<1x1x32xf32>
    %106 = vector.shape_cast %105 : vector<1x1x32xf32> to vector<1x32xf32>
    %cst_34 = arith.constant dense<0.000000e+00> : vector<8xf32>
    %107 = vector.multi_reduction <add>, %102, %cst_34 [1] : vector<8x32xf32> to vector<8xf32>
    %108 = vector.shape_cast %107 : vector<8xf32> to vector<8x1xf32>
    %cst_35 = arith.constant 3.200000e+01 : f32
    %109 = vector.broadcast %cst_35 : f32 to vector<8x1xf32>
    %110 = arith.divf %108, %109 : vector<8x1xf32>
    %111 = vector.broadcast %110 : vector<8x1xf32> to vector<8x32xf32>
    %112 = arith.subf %102, %111 : vector<8x32xf32>
    %113 = arith.mulf %112, %112 : vector<8x32xf32>
    %cst_36 = arith.constant dense<0.000000e+00> : vector<8xf32>
    %114 = vector.multi_reduction <add>, %113, %cst_36 [1] : vector<8x32xf32> to vector<8xf32>
    %115 = vector.shape_cast %114 : vector<8xf32> to vector<8x1xf32>
    %cst_37 = arith.constant 3.200000e+01 : f32
    %116 = vector.broadcast %cst_37 : f32 to vector<8x1xf32>
    %117 = arith.divf %115, %116 : vector<8x1xf32>
    %118 = vector.broadcast %110 : vector<8x1xf32> to vector<8x32xf32>
    %119 = arith.subf %102, %118 : vector<8x32xf32>
    %cst_38 = arith.constant 9.99999974E-6 : f32
    %120 = vector.broadcast %cst_38 : f32 to vector<8x1xf32>
    %121 = arith.addf %117, %120 : vector<8x1xf32>
    %122 = math.rsqrt %121 : vector<8x1xf32>
    %123 = vector.broadcast %122 : vector<8x1xf32> to vector<8x32xf32>
    %124 = arith.mulf %119, %123 : vector<8x32xf32>
    %125 = vector.broadcast %104 : vector<1x32xf32> to vector<8x32xf32>
    %126 = arith.mulf %124, %125 : vector<8x32xf32>
    %127 = vector.broadcast %106 : vector<1x32xf32> to vector<8x32xf32>
    %128 = arith.addf %126, %127 : vector<8x32xf32>
    %129 = arith.truncf %128 : vector<8x32xf32> to vector<8x32xbf16>
    %c0_39 = arith.constant 0 : index
    %c0_40 = arith.constant 0 : index
    %c0_41 = arith.constant 0 : index
    %130 = vector.load %arg10[%c0_39, %c0_40, %c0_41] : memref<1x32x128xbf16, #tpu.memory_space<vmem>>, vector<1x32x128xbf16>
    %131 = vector.shape_cast %130 : vector<1x32x128xbf16> to vector<32x128xbf16>
    %cst_42 = arith.constant dense<0.000000e+00> : vector<8x128xf32>
    %132 = tpu.matmul %129, %131, %cst_42 {dimension_numbers = #tpu.dot_dimension_numbers<[1], [0], [0], [1], [0, 0, 1, 1], [], []>} : vector<8x32xbf16>, vector<32x128xbf16>, vector<8x128xf32> -> vector<8x128xf32>
    %c0_43 = arith.constant 0 : index
    %c0_44 = arith.constant 0 : index
    %c0_45 = arith.constant 0 : index
    %133 = vector.load %arg11[%c0_43, %c0_44, %c0_45] : memref<1x1x128xf32, #tpu.memory_space<vmem>>, vector<1x1x128xf32>
    %134 = vector.shape_cast %133 : vector<1x1x128xf32> to vector<1x128xf32>
    %135 = vector.broadcast %134 : vector<1x128xf32> to vector<8x128xf32>
    %136 = arith.addf %132, %135 : vector<8x128xf32>
    %cst_46 = arith.constant 0.000000e+00 : f32
    %137 = vector.broadcast %cst_46 : f32 to vector<8x128xf32>
    %138 = arith.maximumf %136, %137 : vector<8x128xf32>
    %139 = arith.truncf %138 : vector<8x128xf32> to vector<8x128xbf16>
    %c0_47 = arith.constant 0 : index
    %c0_48 = arith.constant 0 : index
    %c0_49 = arith.constant 0 : index
    %140 = vector.load %arg12[%c0_47, %c0_48, %c0_49] : memref<1x128x32xbf16, #tpu.memory_space<vmem>>, vector<1x128x32xbf16>
    %141 = vector.shape_cast %140 : vector<1x128x32xbf16> to vector<128x32xbf16>
    %cst_50 = arith.constant dense<0.000000e+00> : vector<8x32xf32>
    %142 = tpu.matmul %139, %141, %cst_50 {dimension_numbers = #tpu.dot_dimension_numbers<[1], [0], [0], [1], [0, 0, 1, 1], [], []>} : vector<8x128xbf16>, vector<128x32xbf16>, vector<8x32xf32> -> vector<8x32xf32>
    %c0_51 = arith.constant 0 : index
    %c0_52 = arith.constant 0 : index
    %c0_53 = arith.constant 0 : index
    %143 = vector.load %arg13[%c0_51, %c0_52, %c0_53] : memref<1x1x32xf32, #tpu.memory_space<vmem>>, vector<1x1x32xf32>
    %144 = vector.shape_cast %143 : vector<1x1x32xf32> to vector<1x32xf32>
    %145 = vector.broadcast %144 : vector<1x32xf32> to vector<8x32xf32>
    %146 = arith.addf %142, %145 : vector<8x32xf32>
    %147 = arith.addf %102, %146 : vector<8x32xf32>
    %c0_54 = arith.constant 0 : index
    %c0_55 = arith.constant 0 : index
    %148 = vector.load %arg17[%c0_54, %c0_55] : memref<8x32xf32, #tpu.memory_space<vmem>>, vector<8x32xf32>
    tpu.vector_store %arg17[%c0_54, %c0_55], %147 {strides = array<i32>} : memref<8x32xf32, #tpu.memory_space<vmem>>, vector<8x32xf32>,
    %c1_i32 = arith.constant 1 : i32
    %149 = arith.cmpi eq, %arg1, %c1_i32 : i32
    %150 = arith.extui %149 : i1 to i32
    %c0_i32_56 = arith.constant 0 : i32
    %151 = arith.cmpi ne, %150, %c0_i32_56 : i32
    scf.if %151 {
      %c0_57 = arith.constant 0 : index
      %c0_58 = arith.constant 0 : index
      %152 = vector.load %arg14[%c0_57, %c0_58] : memref<1x32xf32, #tpu.memory_space<vmem>>, vector<1x32xf32>
      %c0_59 = arith.constant 0 : index
      %c0_60 = arith.constant 0 : index
      %153 = vector.load %arg15[%c0_59, %c0_60] : memref<1x32xf32, #tpu.memory_space<vmem>>, vector<1x32xf32>
      %cst_61 = arith.constant dense<0.000000e+00> : vector<8xf32>
      %154 = vector.multi_reduction <add>, %147, %cst_61 [1] : vector<8x32xf32> to vector<8xf32>
      %155 = vector.shape_cast %154 : vector<8xf32> to vector<8x1xf32>
      %cst_62 = arith.constant 3.200000e+01 : f32
      %156 = vector.broadcast %cst_62 : f32 to vector<8x1xf32>
      %157 = arith.divf %155, %156 : vector<8x1xf32>
      %158 = vector.broadcast %157 : vector<8x1xf32> to vector<8x32xf32>
      %159 = arith.subf %147, %158 : vector<8x32xf32>
      %160 = arith.mulf %159, %159 : vector<8x32xf32>
      %cst_63 = arith.constant dense<0.000000e+00> : vector<8xf32>
      %161 = vector.multi_reduction <add>, %160, %cst_63 [1] : vector<8x32xf32> to vector<8xf32>
      %162 = vector.shape_cast %161 : vector<8xf32> to vector<8x1xf32>
      %cst_64 = arith.constant 3.200000e+01 : f32
      %163 = vector.broadcast %cst_64 : f32 to vector<8x1xf32>
      %164 = arith.divf %162, %163 : vector<8x1xf32>
      %165 = vector.broadcast %157 : vector<8x1xf32> to vector<8x32xf32>
      %166 = arith.subf %147, %165 : vector<8x32xf32>
      %cst_65 = arith.constant 9.99999974E-6 : f32
      %167 = vector.broadcast %cst_65 : f32 to vector<8x1xf32>
      %168 = arith.addf %164, %167 : vector<8x1xf32>
      %169 = math.rsqrt %168 : vector<8x1xf32>
      %170 = vector.broadcast %169 : vector<8x1xf32> to vector<8x32xf32>
      %171 = arith.mulf %166, %170 : vector<8x32xf32>
      %172 = vector.broadcast %152 : vector<1x32xf32> to vector<8x32xf32>
      %173 = arith.mulf %171, %172 : vector<8x32xf32>
      %174 = vector.broadcast %153 : vector<1x32xf32> to vector<8x32xf32>
      %175 = arith.addf %173, %174 : vector<8x32xf32>
      %176 = arith.truncf %175 : vector<8x32xf32> to vector<8x32xbf16>
      %c0_66 = arith.constant 0 : index
      %c0_67 = arith.constant 0 : index
      %c0_68 = arith.constant 0 : index
      %177 = vector.load %arg16[%c0_66, %c0_67, %c0_68] : memref<1x8x32xbf16, #tpu.memory_space<vmem>>, vector<1x8x32xbf16>
      %178 = vector.shape_cast %177 : vector<1x8x32xbf16> to vector<8x32xbf16>
      %179 = vector.shape_cast %176 : vector<8x32xbf16> to vector<1x8x32xbf16>
      tpu.vector_store %arg16[%c0_66, %c0_67, %c0_68], %179 {strides = array<i32>} : memref<1x8x32xbf16, #tpu.memory_space<vmem>>, vector<1x8x32xbf16>,
    } else {
    }
    return
  }
  func.func @transform_0(%arg0: i32, %arg1: i32) -> (i32, i32, i32) {
    %c0_i32 = arith.constant 0 : i32
    %c0_i32_0 = arith.constant 0 : i32
    %c0_i32_1 = arith.constant 0 : i32
    return %arg0, %c0_i32, %c0_i32_0 : i32, i32, i32
  }
  func.func @transform_1(%arg0: i32, %arg1: i32) -> (i32, i32, i32) {
    %c0_i32 = arith.constant 0 : i32
    %c0_i32_0 = arith.constant 0 : i32
    %c0_i32_1 = arith.constant 0 : i32
    return %arg1, %c0_i32, %c0_i32_0 : i32, i32, i32
  }
  func.func @transform_2(%arg0: i32, %arg1: i32) -> (i32, i32, i32) {
    %c0_i32 = arith.constant 0 : i32
    %c0_i32_0 = arith.constant 0 : i32
    %c0_i32_1 = arith.constant 0 : i32
    return %arg1, %c0_i32, %c0_i32_0 : i32, i32, i32
  }
  func.func @transform_3(%arg0: i32, %arg1: i32) -> (i32, i32, i32) {
    %c0_i32 = arith.constant 0 : i32
    %c0_i32_0 = arith.constant 0 : i32
    %c0_i32_1 = arith.constant 0 : i32
    return %arg1, %c0_i32, %c0_i32_0 : i32, i32, i32
  }
  func.func @transform_4(%arg0: i32, %arg1: i32) -> (i32, i32, i32) {
    %c0_i32 = arith.constant 0 : i32
    %c0_i32_0 = arith.constant 0 : i32
    %c0_i32_1 = arith.constant 0 : i32
    return %arg1, %c0_i32, %c0_i32_0 : i32, i32, i32
  }
  func.func @transform_5(%arg0: i32, %arg1: i32) -> (i32, i32, i32) {
    %c0_i32 = arith.constant 0 : i32
    %c0_i32_0 = arith.constant 0 : i32
    %c0_i32_1 = arith.constant 0 : i32
    return %arg1, %c0_i32, %c0_i32_0 : i32, i32, i32
  }
  func.func @transform_6(%arg0: i32, %arg1: i32) -> (i32, i32, i32) {
    %c0_i32 = arith.constant 0 : i32
    %c0_i32_0 = arith.constant 0 : i32
    %c0_i32_1 = arith.constant 0 : i32
    return %arg1, %c0_i32, %c0_i32_0 : i32, i32, i32
  }
  func.func @transform_7(%arg0: i32, %arg1: i32) -> (i32, i32, i32) {
    %c0_i32 = arith.constant 0 : i32
    %c0_i32_0 = arith.constant 0 : i32
    %c0_i32_1 = arith.constant 0 : i32
    return %arg1, %c0_i32, %c0_i32_0 : i32, i32, i32
  }
  func.func @transform_8(%arg0: i32, %arg1: i32) -> (i32, i32, i32) {
    %c0_i32 = arith.constant 0 : i32
    %c0_i32_0 = arith.constant 0 : i32
    %c0_i32_1 = arith.constant 0 : i32
    return %arg1, %c0_i32, %c0_i32_0 : i32, i32, i32
  }
  func.func @transform_9(%arg0: i32, %arg1: i32) -> (i32, i32, i32) {
    %c0_i32 = arith.constant 0 : i32
    %c0_i32_0 = arith.constant 0 : i32
    %c0_i32_1 = arith.constant 0 : i32
    return %arg1, %c0_i32, %c0_i32_0 : i32, i32, i32
  }
  func.func @transform_10(%arg0: i32, %arg1: i32) -> (i32, i32, i32) {
    %c0_i32 = arith.constant 0 : i32
    %c0_i32_0 = arith.constant 0 : i32
    %c0_i32_1 = arith.constant 0 : i32
    return %arg1, %c0_i32, %c0_i32_0 : i32, i32, i32
  }
  func.func @transform_11(%arg0: i32, %arg1: i32) -> (i32, i32, i32) {
    %c0_i32 = arith.constant 0 : i32
    %c0_i32_0 = arith.constant 0 : i32
    %c0_i32_1 = arith.constant 0 : i32
    return %arg1, %c0_i32, %c0_i32_0 : i32, i32, i32
  }
  func.func @transform_12(%arg0: i32, %arg1: i32) -> (i32, i32) {
    %c0_i32 = arith.constant 0 : i32
    %c0_i32_0 = arith.constant 0 : i32
    %c0_i32_1 = arith.constant 0 : i32
    return %c0_i32, %c0_i32_0 : i32, i32
  }
  func.func @transform_13(%arg0: i32, %arg1: i32) -> (i32, i32) {
    %c0_i32 = arith.constant 0 : i32
    %c0_i32_0 = arith.constant 0 : i32
    %c0_i32_1 = arith.constant 0 : i32
    return %c0_i32, %c0_i32_0 : i32, i32
  }
  func.func @transform_14(%arg0: i32, %arg1: i32) -> (i32, i32, i32) {
    %c0_i32 = arith.constant 0 : i32
    %c0_i32_0 = arith.constant 0 : i32
    %c0_i32_1 = arith.constant 0 : i32
    return %arg0, %c0_i32, %c0_i32_0 : i32, i32, i32
  }
}

module attributes {stable_mosaic.version = 11 : i64} {
  func.func @lm_head_kernel(%arg0: i32, %arg1: i32, %arg2: memref<1x8x32xbf16, #tpu.memory_space<vmem>>, %arg3: memref<32x128xbf16, #tpu.memory_space<vmem>>, %arg4: memref<1x128xf32, #tpu.memory_space<vmem>>, %arg5: memref<1x8x128xf32, #tpu.memory_space<vmem>>) attributes {dimension_semantics = [#tpu.dimension_semantics<parallel>, #tpu.dimension_semantics<arbitrary>], iteration_bounds = array<i64: 1, 2>, scalar_prefetch = 0 : i64, scratch_operands = 0 : i64, tpu.core_type = #tpu.core_type<tc>, window_params = [{transform_indices = @transform_0, window_bounds = array<i64: 1, 8, 32>}, {transform_indices = @transform_1, window_bounds = array<i64: 32, 128>}, {transform_indices = @transform_2, window_bounds = array<i64: 1, 128>}, {transform_indices = @transform_3, window_bounds = array<i64: 1, 8, 128>}]} {
    %c0 = arith.constant 0 : index
    %c0_0 = arith.constant 0 : index
    %c0_1 = arith.constant 0 : index
    %0 = vector.load %arg2[%c0, %c0_0, %c0_1] : memref<1x8x32xbf16, #tpu.memory_space<vmem>>, vector<1x8x32xbf16>
    %1 = vector.shape_cast %0 : vector<1x8x32xbf16> to vector<8x32xbf16>
    %c0_2 = arith.constant 0 : index
    %c0_3 = arith.constant 0 : index
    %2 = vector.load %arg3[%c0_2, %c0_3] : memref<32x128xbf16, #tpu.memory_space<vmem>>, vector<32x128xbf16>
    %cst = arith.constant dense<0.000000e+00> : vector<8x128xf32>
    %3 = tpu.matmul %1, %2, %cst {dimension_numbers = #tpu.dot_dimension_numbers<[1], [0], [0], [1], [0, 0, 1, 1], [], []>} : vector<8x32xbf16>, vector<32x128xbf16>, vector<8x128xf32> -> vector<8x128xf32>
    %c0_4 = arith.constant 0 : index
    %c0_5 = arith.constant 0 : index
    %4 = vector.load %arg4[%c0_4, %c0_5] : memref<1x128xf32, #tpu.memory_space<vmem>>, vector<1x128xf32>
    %5 = vector.broadcast %4 : vector<1x128xf32> to vector<8x128xf32>
    %6 = arith.addf %3, %5 : vector<8x128xf32>
    %c0_6 = arith.constant 0 : index
    %c0_7 = arith.constant 0 : index
    %c0_8 = arith.constant 0 : index
    %7 = vector.load %arg5[%c0_6, %c0_7, %c0_8] : memref<1x8x128xf32, #tpu.memory_space<vmem>>, vector<1x8x128xf32>
    %8 = vector.shape_cast %7 : vector<1x8x128xf32> to vector<8x128xf32>
    %9 = vector.shape_cast %6 : vector<8x128xf32> to vector<1x8x128xf32>
    tpu.vector_store %arg5[%c0_6, %c0_7, %c0_8], %9 {strides = array<i32>} : memref<1x8x128xf32, #tpu.memory_space<vmem>>, vector<1x8x128xf32>,
    return
  }
  func.func @transform_0(%arg0: i32, %arg1: i32) -> (i32, i32, i32) {
    %c0_i32 = arith.constant 0 : i32
    %c0_i32_0 = arith.constant 0 : i32
    %c0_i32_1 = arith.constant 0 : i32
    return %arg1, %c0_i32, %c0_i32_0 : i32, i32, i32
  }
  func.func @transform_1(%arg0: i32, %arg1: i32) -> (i32, i32) {
    %c0_i32 = arith.constant 0 : i32
    %c0_i32_0 = arith.constant 0 : i32
    return %c0_i32, %arg0 : i32, i32
  }
  func.func @transform_2(%arg0: i32, %arg1: i32) -> (i32, i32) {
    %c0_i32 = arith.constant 0 : i32
    %c0_i32_0 = arith.constant 0 : i32
    return %c0_i32, %arg0 : i32, i32
  }
  func.func @transform_3(%arg0: i32, %arg1: i32) -> (i32, i32, i32) {
    %c0_i32 = arith.constant 0 : i32
    %c0_i32_0 = arith.constant 0 : i32
    return %arg1, %c0_i32, %arg0 : i32, i32, i32
  }
}

</mosaic_0001>

<llo_original>
// kernel: transformer_forward.3
$region0: #{transformer_forward.3}
  #allocation0 [shape = 'u32[]', space=smem, size = 0x4, offset = 0x4, fixed_abs, tag = 'smem constant byte address 0x4 - core index']
  #allocation1 [shape = 'u32[144,128]{1,0:T(1,128)}', space=vmem, size = 0x12000, scoped, tag = 'internal scratch']
  %s0 = inlined_call_operand.vmem [shape: bf16[2,8,32], index: 0, kind: input, shape index: {}]
  %s1 = inlined_call_operand.vmem [shape: bf16[32,128], index: 1, kind: input, shape index: {}]
  %s2 = inlined_call_operand.vmem [shape: f32[1,128], index: 2, kind: input, shape index: {}]
  %s3 = inlined_call_operand.hbm [shape: f32[2,8,128], index: 3, kind: output, shape index: {}]
  %s4 = sld [smem:[#allocation0]]
  $region45: #{transformer_forward.3} parent=0
    _
  %s6 = ssub.s32 1, %s4
  %s7 = scalar_select 0, %s6, %s4
  $region1: #{transformer_forward.3} parent=0
    #allocation2 [shape = 'u8[8192]{0}', space=vmem, size = 0x2000, scoped, tag = 'output window, operand 0']
    #allocation3 [shape = 's32[2]{0}', space=sflag, size = 0x8, scoped, tag = 'scoped memory for transformer_forward.3']
    %8 = vsyncpa [#allocation3], 0
    %s9 = scalar_lea.sflag [#allocation3], 1
    %10 = vsyncpa %s9, 0
    loop: start=0, step=1, limit=4
    $region2: #{transformer_forward.3} parent=1 // loop_pre_header
      _
    $region3: #{transformer_forward.3} parent=1 // loop_header
      %s12 = sphi 0, %s16
      %p13 = scmp.ge.s32.totalorder %s12, 4
      %s19 = sphi 0, %s31
      %s20 = sphi 0, %s27
      %s21 = sphi 0, %s19
      %s22 = sphi 0, %s20
      %s23 = sphi 0, %s21
      %s24 = sphi 0, %s22
      %s34 = sphi 0, %s36
      %s37 = sphi 0, %s34
      %s38 = sphi 0, %s37
      %s54 = sphi 0, %s38
      %s60 = sphi 0, %s62
      %s63 = sphi 0, %s60
      %s64 = sphi 0, %s63
      %s80 = sphi 0, %s64
      %s86 = sphi 0, %s88
      %s89 = sphi 0, %s86
      %s90 = sphi 0, %s89
      %s106 = sphi 0, %s90
      %s114 = sphi 0, %s116
      %s117 = sphi 0, %s114
      %s118 = sphi 0, %s117
      %s134 = sphi 0, %s118
    $region4: #{transformer_forward.3} parent=1 // loop_header_branch
      %15 = sbr.rel (%p13) target = $region8
    $region5: #{transformer_forward.3} parent=1 // loop_body
      %s17 = ssub.s32 %s12, 1
      %s18 = ssub.s32 %s12, 2
      %s25 = sadd.s32 1, %s20
      %p26 = scmp.ge.s32.totalorder %s25, 2
      %s27 = scalar_select %p26, 0, %s25
      %s28 = sadd.s32 1, %s19
      %s29 = scalar_select %p26, %s28, %s19
      %p30 = scmp.ge.s32.totalorder %s29, 1
      %s31 = scalar_select %p30, 0, %s29
      %s32 = ssub.s32 %s20, %s27
      %p33 = scmp.eq.s32.totalorder %s32, 0
      %s35 = sadd.s32 %s34, 1
      %s36 = scalar_select %p33, %s34, %s35
      %p39 = pneg %p33
      %p40 = scmp.eq.s32.totalorder %s12, 1
      %p41 = por %p39, %p40
      %p42 = scmp.ne.s32.totalorder %s34, %s37
      %p43 = scmp.eq.s32.totalorder %s12, 0
      %p44 = por %p42, %p43
      %p45 = scmp.ne.s32.totalorder %s34, %s37
      %p46 = scmp.eq.s32.totalorder %s17, 1
      %p47 = por %p45, %p46
      %p48 = scmp.ne.s32.totalorder %s37, %s38
      %p49 = scmp.eq.s32.totalorder %s17, 0
      %p50 = por %p48, %p49
      %p51 = scmp.ne.s32.totalorder %s37, %s38
      %p52 = scmp.eq.s32.totalorder %s18, 1
      %p53 = por %p51, %p52
      %p55 = scmp.ne.s32.totalorder %s38, %s54
      %p56 = scmp.eq.s32.totalorder %s18, 0
      %p57 = por %p55, %p56
      %s58 = ssub.s32 %s19, %s31
      %p59 = scmp.eq.s32.totalorder %s58, 0
      %s61 = sadd.s32 %s60, 1
      %s62 = scalar_select %p59, %s60, %s61
      %p65 = pneg %p59
      %p66 = scmp.eq.s32.totalorder %s12, 1
      %p67 = por %p65, %p66
      %p68 = scmp.ne.s32.totalorder %s60, %s63
      %p69 = scmp.eq.s32.totalorder %s12, 0
      %p70 = por %p68, %p69
      %p71 = scmp.ne.s32.totalorder %s60, %s63
      %p72 = scmp.eq.s32.totalorder %s17, 1
      %p73 = por %p71, %p72
      %p74 = scmp.ne.s32.totalorder %s63, %s64
      %p75 = scmp.eq.s32.totalorder %s17, 0
      %p76 = por %p74, %p75
      %p77 = scmp.ne.s32.totalorder %s63, %s64
      %p78 = scmp.eq.s32.totalorder %s18, 1
      %p79 = por %p77, %p78
      %p81 = scmp.ne.s32.totalorder %s64, %s80
      %p82 = scmp.eq.s32.totalorder %s18, 0
      %p83 = por %p81, %p82
      %s84 = ssub.s32 %s19, %s31
      %p85 = scmp.eq.s32.totalorder %s84, 0
      %s87 = sadd.s32 %s86, 1
      %s88 = scalar_select %p85, %s86, %s87
      %p91 = pneg %p85
      %p92 = scmp.eq.s32.totalorder %s12, 1
      %p93 = por %p91, %p92
      %p94 = scmp.ne.s32.totalorder %s86, %s89
      %p95 = scmp.eq.s32.totalorder %s12, 0
      %p96 = por %p94, %p95
      %p97 = scmp.ne.s32.totalorder %s86, %s89
      %p98 = scmp.eq.s32.totalorder %s17, 1
      %p99 = por %p97, %p98
      %p100 = scmp.ne.s32.totalorder %s89, %s90
      %p101 = scmp.eq.s32.totalorder %s17, 0
      %p102 = por %p100, %p101
      %p103 = scmp.ne.s32.totalorder %s89, %s90
      %p104 = scmp.eq.s32.totalorder %s18, 1
      %p105 = por %p103, %p104
      %p107 = scmp.ne.s32.totalorder %s90, %s106
      %p108 = scmp.eq.s32.totalorder %s18, 0
      %p109 = por %p107, %p108
      %s110 = ssub.s32 %s20, %s27
      %s111 = ssub.s32 %s19, %s31
      %s112 = sor.u32 %s110, %s111
      %p113 = scmp.eq.s32.totalorder %s112, 0
      %s115 = sadd.s32 %s114, 1
      %s116 = scalar_select %p113, %s114, %s115
      %p119 = pneg %p113
      %p120 = scmp.eq.s32.totalorder %s12, 1
      %p121 = por %p119, %p120
      %p122 = scmp.ne.s32.totalorder %s114, %s117
      %p123 = scmp.eq.s32.totalorder %s12, 0
      %p124 = por %p122, %p123
      %p125 = scmp.ne.s32.totalorder %s114, %s117
      %p126 = scmp.eq.s32.totalorder %s17, 1
      %p127 = por %p125, %p126
      %p128 = scmp.ne.s32.totalorder %s117, %s118
      %p129 = scmp.eq.s32.totalorder %s17, 0
      %p130 = por %p128, %p129
      %p131 = scmp.ne.s32.totalorder %s117, %s118
      %p132 = scmp.eq.s32.totalorder %s18, 1
      %p133 = por %p131, %p132
      %p135 = scmp.ne.s32.totalorder %s118, %s134
      %p136 = scmp.eq.s32.totalorder %s18, 0
      %p137 = por %p135, %p136
      %p138 = scmp.le.s32.totalorder 1, %s12
      %p139 = scmp.lt.s32.totalorder %s12, 3
      %p140 = pnand %p138, %p139
      %p141 = pneg %p140
      // Predicated region
      $region9: #{transformer_forward.3} parent=5 // pred_check
        _
      $region10: #{transformer_forward.3} parent=5 // pred_check_branch
        %143 = sbr.rel (%p140) target = $region12
      $region11: #{transformer_forward.3} parent=5 // pred_region
        %s144 = ssub.s32 %s12, 1
        // Predicated region
        $region13: #{transformer_forward.3} parent=11 // pred_check
          %p145 = pneg %p76
        $region14: #{transformer_forward.3} parent=11 // pred_check_branch
          %147 = sbr.rel (%p145) target = $region16
        $region15: #{transformer_forward.3} parent=11 // pred_region
          %p148 = scmp.lt.s32.totalorder %s21, 0
          %s149 = scalar_select %p148, %s21, 0
          %s150 = smul.addr %s149, 4
          %s151 = scalar_lea.vmem %s1, %s150
        $region16: #{transformer_forward.3} parent=11 // pred_fallthru
          _
        // Predicated region
        $region17: #{transformer_forward.3} parent=11 // pred_check
          %p152 = pneg %p102
        $region18: #{transformer_forward.3} parent=11 // pred_check_branch
          %154 = sbr.rel (%p152) target = $region20
        $region19: #{transformer_forward.3} parent=11 // pred_region
          %p155 = scmp.lt.s32.totalorder %s21, 0
          %s156 = scalar_select %p155, %s21, 0
          %s157 = scalar_lea.vmem %s2, %s156
        $region20: #{transformer_forward.3} parent=11 // pred_fallthru
          _
      $region12: #{transformer_forward.3} parent=5 // pred_fallthru
        _
      %p158 = scmp.lt.s32.totalorder %s12, 2
      // Predicated region
      $region21: #{transformer_forward.3} parent=5 // pred_check
        %p159 = pneg %p158
      $region22: #{transformer_forward.3} parent=5 // pred_check_branch
        %161 = sbr.rel (%p159) target = $region24
      $region23: #{transformer_forward.3} parent=5 // pred_region
        // Predicated region
        $region25: #{transformer_forward.3} parent=23 // pred_check
          %p162 = pneg %p44
        $region26: #{transformer_forward.3} parent=23 // pred_check_branch
          %164 = sbr.rel (%p162) target = $region28
        $region27: #{transformer_forward.3} parent=23 // pred_region
          %p165 = scmp.lt.s32.totalorder %s20, 1
          %s166 = scalar_select %p165, %s20, 1
          %s167 = smul.addr %s166, 4
          %s168 = scalar_lea.vmem %s0, %s167
        $region28: #{transformer_forward.3} parent=23 // pred_fallthru
          _
      $region24: #{transformer_forward.3} parent=5 // pred_fallthru
        _
      %p169 = scmp.le.s32.totalorder 1, %s12
      %p170 = scmp.lt.s32.totalorder %s12, 3
      %p171 = pnand %p169, %p170
      %p172 = pneg %p171
      // Predicated region
      $region29: #{transformer_forward.3} parent=5 // pred_check
        _
      $region30: #{transformer_forward.3} parent=5 // pred_check_branch
        %174 = sbr.rel (%p171) target = $region32
      $region31: #{transformer_forward.3} parent=5 // pred_region
        %s175 = ssub.s32 %s12, 1
        %p176 = scmp.lt.s32.totalorder %s22, 1
        %s177 = scalar_select %p176, %s22, 1
        %s178 = smul.addr %s177, 4
        %s179 = scalar_lea.vmem %s0, %s178
        %p180 = pneg %p50
        %p181 = pneg %p47
        %p182 = scmp.lt.s32.totalorder %s21, 0
        %s183 = scalar_select %p182, %s21, 0
        %s184 = smul.addr %s183, 4
        %s185 = scalar_lea.vmem %s1, %s184
        %p186 = pneg %p76
        %p187 = pneg %p73
        %p188 = scmp.lt.s32.totalorder %s21, 0
        %s189 = scalar_select %p188, %s21, 0
        %s190 = scalar_lea.vmem %s2, %s189
        %p191 = pneg %p102
        %p192 = pneg %p99
        %p193 = pneg %p130
        %p194 = pneg %p127
        %s195 = sand.u32 %s117, 1
        %s196 = scalar_lea.sflag [#allocation3], %s195
        %s197 = sand.u32 %s117, 1
        %s198 = smul.addr %s197, 8
        %s199 = scalar_lea.vmem [#allocation2], %s198
        %p200 = scmp.lt.s32.totalorder %s22, 1
        %s201 = scalar_select %p200, %s22, 1
        %s202 = smul.addr %s201, 4
        %s203 = scalar_lea.vmem %s0, %s202
        %p204 = scmp.lt.s32.totalorder %s21, 0
        %s205 = scalar_select %p204, %s21, 0
        %s206 = smul.addr %s205, 4
        %s207 = scalar_lea.vmem %s1, %s206
        %p208 = scmp.lt.s32.totalorder %s21, 0
        %s209 = scalar_select %p208, %s21, 0
        %s210 = scalar_lea.vmem %s2, %s209
        %v212 = vld [vmem:[%s203] sm:$0xf]
        %v213 = vld [vmem:[%s207] sm:$0xf]
        %v214 = vld [vmem:[%s207 + $0x4] sm:$0xf]
        %v215 = vld [vmem:[%s207 + $0x8] sm:$0xf]
        %v216 = vld [vmem:[%s207 + $0xc] sm:$0xf]
        %v217 = vld [vmem:[%s210] sm:$0x1]
        %v219 = vlaneseq
        %v220 = vshrl.u32 %v219, 7
        %v221 = vsub.s32 0, %v220
        %v222 = vrot.slane %v217, %v221
        %v228 = vunpack.c.l.b16 %v213
        %v229 = vunpack.c.l.b16 %v214
        %v230 = vunpack.c.l.b16 %v215
        %v231 = vunpack.c.l.b16 %v216
        %v232 = vpack.c.b16 %v229, %v228
        %v233 = vpack.c.b16 %v231, %v230
        %vm236 = vcmask 261120
        %v238 = vsel %vm236, %v212, 0
        %240 = vmatprep.subr.bf16.mxu0 0
        %241 = vmatpush1.bf16.msra.mxu0 %v232
        %242 = vmatprep.subr.bf16.mxu0 0
        %243 = vmatpush1.bf16.msra.mxu0 %v233
        %244 = vmatprep.subr.bf16.mxu0 0
        %245 = vmatpush1.bf16.msra.mxu0 0
        %246 = vmatprep.subr.bf16.mxu0 0
        %247 = vmatpush1.bf16.msra.mxu0 0
        %248 = vmatprep.subr.bf16.mxu0 0
        %249 = vmatpush1.bf16.msra.mxu0 0
        %250 = vmatprep.subr.bf16.mxu0 0
        %251 = vmatpush1.bf16.msra.mxu0 0
        %252 = vmatprep.subr.bf16.mxu0 0
        %253 = vmatpush1.bf16.msra.mxu0 0
        %254 = vmatprep.subr.bf16.mxu0 0
        %255 = vmatpush1.bf16.msra.mxu0 0
        %256 = vmatprep.subr.bf16.mxu0 0
        %257 = vmatpush1.bf16.msra.mxu0 0
        %258 = vmatprep.subr.bf16.mxu0 0
        %259 = vmatpush1.bf16.msra.mxu0 0
        %260 = vmatprep.subr.bf16.mxu0 0
        %261 = vmatpush1.bf16.msra.mxu0 0
        %262 = vmatprep.subr.bf16.mxu0 0
        %263 = vmatpush1.bf16.msra.mxu0 0
        %264 = vmatprep.subr.bf16.mxu0 0
        %265 = vmatpush1.bf16.msra.mxu0 0
        %266 = vmatprep.subr.bf16.mxu0 0
        %267 = vmatpush1.bf16.msra.mxu0 0
        %268 = vmatprep.subr.bf16.mxu0 0
        %269 = vmatpush1.bf16.msra.mxu0 0
        %270 = vmatprep.subr.bf16.mxu0 0
        %271 = vmatpush1.bf16.msra.mxu0 0
        %272 = vmatprep.mubr.bf16.mxu0 0
        %273 = vmatmul.mubr.bf16.gmra.mrb[0].mxu0 %v238
        %v274 = vpop.f32.mrb[0].mxu0
        %v275 = vadd.f32 %v222, %v274
        %v276 = vpop.f32.mrb[0].mxu0
        %v277 = vpop.f32.mrb[0].mxu0
        %v278 = vpop.f32.mrb[0].mxu0
        %279 = vdwg.mxu0
        %280 = vst [vmem:[%s199] sm:$0xff] %v275
        %s281 = sand.u32 %s117, 1
        %s282 = scalar_lea.sflag [#allocation3], %s281
        %s283 = sand.u32 %s117, 1
        %s284 = smul.addr %s283, 8
        %s285 = scalar_lea.vmem [#allocation2], %s284
        // Predicated region
        $region33: #{transformer_forward.3} parent=31 // pred_check
          %p286 = pneg %p127
        $region34: #{transformer_forward.3} parent=31 // pred_check_branch
          %288 = sbr.rel (%p286) target = $region36
        $region35: #{transformer_forward.3} parent=31 // pred_region
          %s290 = ssub.s32 128, 128
          %291 = vsyncadd %s282, %s290
          %s292 = sadd.s32 %s21, %s22
          %s293 = smul.addr %s292, 128
          %s294 = scalar_lea.hbm %s3, %s293
          %s296 = sshll.u32 %s285, 4
          %s297 = int_to_ptr.vmem [resolvable:$true] %s296
          %299 = dma.vmem_to_hbm [thread:$0]  %s297, 128, %s294, %s282
        $region36: #{transformer_forward.3} parent=31 // pred_fallthru
          _
      $region32: #{transformer_forward.3} parent=5 // pred_fallthru
        _
      %p300 = scmp.le.s32.totalorder 2, %s12
      // Predicated region
      $region37: #{transformer_forward.3} parent=5 // pred_check
        %p301 = pneg %p300
      $region38: #{transformer_forward.3} parent=5 // pred_check_branch
        %303 = sbr.rel (%p301) target = $region40
      $region39: #{transformer_forward.3} parent=5 // pred_region
        %s304 = ssub.s32 %s12, 2
        // Predicated region
        $region41: #{transformer_forward.3} parent=39 // pred_check
          %p305 = pneg %p133
        $region42: #{transformer_forward.3} parent=39 // pred_check_branch
          %307 = sbr.rel (%p305) target = $region44
        $region43: #{transformer_forward.3} parent=39 // pred_region
          %s308 = sand.u32 %s118, 1
          %s309 = scalar_lea.sflag [#allocation3], %s308
          %s310 = sand.u32 %s118, 1
          %s311 = smul.addr %s310, 8
          %s312 = scalar_lea.vmem [#allocation2], %s311
          %313 = dma.done %s309, 128
        $region44: #{transformer_forward.3} parent=39 // pred_fallthru
          _
      $region40: #{transformer_forward.3} parent=5 // pred_fallthru
        _
    $region6: #{transformer_forward.3} parent=1 // loop_footer
      %s16 = sadd.s32 1, %s12
    $region7: #{transformer_forward.3} parent=1 // loop_footer_branch
      %11 = sbr.rel target = $region3
    $region8: #{transformer_forward.3} parent=1 // loop_exit
      _
    %314 = vsyncpa [#allocation3], 1
    %s315 = scalar_lea.sflag [#allocation3], 1
    %316 = vsyncpa %s315, 1

// kernel: transformer_forward.2
$region0: #{transformer_forward.2}
  #allocation0 [shape = 'u32[]', space=smem, size = 0x4, offset = 0x4, fixed_abs, tag = 'smem constant byte address 0x4 - core index']
  #allocation1 [shape = 'u32[144,128]{1,0:T(1,128)}', space=vmem, size = 0x12000, scoped, tag = 'internal scratch']
  #allocation2 [shape = 'f32[8,32]{1,0:T(8,128)}', space=vmem, size = 0x1000, scoped, tag = 'scratch operand']
  %s0 = inlined_call_operand.vmem [shape: f32[2,8,32], index: 0, kind: input, shape index: {}]
  %s1 = inlined_call_operand.vmem [shape: f32[2,1,32], index: 1, kind: input, shape index: {}]
  %s2 = inlined_call_operand.vmem [shape: f32[2,1,32], index: 2, kind: input, shape index: {}]
  %s3 = inlined_call_operand.vmem [shape: bf16[2,32,96], index: 3, kind: input, shape index: {}]
  %s4 = inlined_call_operand.vmem [shape: bf16[2,32,32], index: 4, kind: input, shape index: {}]
  %s5 = inlined_call_operand.vmem [shape: f32[2,1,32], index: 5, kind: input, shape index: {}]
  %s6 = inlined_call_operand.vmem [shape: f32[2,1,32], index: 6, kind: input, shape index: {}]
  %s7 = inlined_call_operand.vmem [shape: f32[2,1,32], index: 7, kind: input, shape index: {}]
  %s8 = inlined_call_operand.vmem [shape: bf16[2,32,128], index: 8, kind: input, shape index: {}]
  %s9 = inlined_call_operand.vmem [shape: f32[2,1,128], index: 9, kind: input, shape index: {}]
  %s10 = inlined_call_operand.vmem [shape: bf16[2,128,32], index: 10, kind: input, shape index: {}]
  %s11 = inlined_call_operand.vmem [shape: f32[2,1,32], index: 11, kind: input, shape index: {}]
  %s12 = inlined_call_operand.vmem [shape: f32[1,32], index: 12, kind: input, shape index: {}]
  %s13 = inlined_call_operand.vmem [shape: f32[1,32], index: 13, kind: input, shape index: {}]
  %s14 = inlined_call_operand.vmem [shape: bf16[2,8,32], index: 14, kind: output, shape index: {}]
  %s15 = sld [smem:[#allocation0]]
  $region97: #{transformer_forward.2} parent=0
    _
  %s17 = ssub.s32 1, %s15
  %s18 = scalar_select 0, %s17, %s15
  loop: start=0, step=1, limit=6
  $region2: #{transformer_forward.2} parent=0 // loop_pre_header
    _
  $region3: #{transformer_forward.2} parent=0 // loop_header
    %s20 = sphi 0, %s24
    %p21 = scmp.ge.s32.totalorder %s20, 6
    %s27 = sphi 0, %s39
    %s28 = sphi 0, %s35
    %s29 = sphi 0, %s27
    %s30 = sphi 0, %s28
    %s31 = sphi 0, %s29
    %s32 = sphi 0, %s30
    %s42 = sphi 0, %s44
    %s45 = sphi 0, %s42
    %s46 = sphi 0, %s45
    %s62 = sphi 0, %s46
    %s68 = sphi 0, %s70
    %s71 = sphi 0, %s68
    %s72 = sphi 0, %s71
    %s88 = sphi 0, %s72
    %s94 = sphi 0, %s96
    %s97 = sphi 0, %s94
    %s98 = sphi 0, %s97
    %s114 = sphi 0, %s98
    %s120 = sphi 0, %s122
    %s123 = sphi 0, %s120
    %s124 = sphi 0, %s123
    %s140 = sphi 0, %s124
    %s146 = sphi 0, %s148
    %s149 = sphi 0, %s146
    %s150 = sphi 0, %s149
    %s166 = sphi 0, %s150
    %s172 = sphi 0, %s174
    %s175 = sphi 0, %s172
    %s176 = sphi 0, %s175
    %s192 = sphi 0, %s176
    %s198 = sphi 0, %s200
    %s201 = sphi 0, %s198
    %s202 = sphi 0, %s201
    %s218 = sphi 0, %s202
    %s224 = sphi 0, %s226
    %s227 = sphi 0, %s224
    %s228 = sphi 0, %s227
    %s244 = sphi 0, %s228
    %s250 = sphi 0, %s252
    %s253 = sphi 0, %s250
    %s254 = sphi 0, %s253
    %s270 = sphi 0, %s254
    %s276 = sphi 0, %s278
    %s279 = sphi 0, %s276
    %s280 = sphi 0, %s279
    %s296 = sphi 0, %s280
    %s302 = sphi 0, %s304
    %s305 = sphi 0, %s302
    %s306 = sphi 0, %s305
    %s322 = sphi 0, %s306
    %s328 = sphi 0, %s330
    %s331 = sphi 0, %s328
    %s332 = sphi 0, %s331
    %s348 = sphi 0, %s332
    %s352 = sphi 0, %s352
    %s354 = sphi 0, %s352
    %s355 = sphi 0, %s354
    %s369 = sphi 0, %s355
    %s373 = sphi 0, %s373
    %s375 = sphi 0, %s373
    %s376 = sphi 0, %s375
    %s390 = sphi 0, %s376
    %s396 = sphi 0, %s398
    %s399 = sphi 0, %s396
    %s400 = sphi 0, %s399
    %s416 = sphi 0, %s400
  $region4: #{transformer_forward.2} parent=0 // loop_header_branch
    %23 = sbr.rel (%p21) target = $region8
  $region5: #{transformer_forward.2} parent=0 // loop_body
    %s25 = ssub.s32 %s20, 1
    %s26 = ssub.s32 %s20, 2
    %s33 = sadd.s32 1, %s28
    %p34 = scmp.ge.s32.totalorder %s33, 2
    %s35 = scalar_select %p34, 0, %s33
    %s36 = sadd.s32 1, %s27
    %s37 = scalar_select %p34, %s36, %s27
    %p38 = scmp.ge.s32.totalorder %s37, 2
    %s39 = scalar_select %p38, 0, %s37
    %s40 = ssub.s32 %s27, %s39
    %p41 = scmp.eq.s32.totalorder %s40, 0
    %s43 = sadd.s32 %s42, 1
    %s44 = scalar_select %p41, %s42, %s43
    %p47 = pneg %p41
    %p48 = scmp.eq.s32.totalorder %s20, 3
    %p49 = por %p47, %p48
    %p50 = scmp.ne.s32.totalorder %s42, %s45
    %p51 = scmp.eq.s32.totalorder %s20, 0
    %p52 = por %p50, %p51
    %p53 = scmp.ne.s32.totalorder %s42, %s45
    %p54 = scmp.eq.s32.totalorder %s25, 3
    %p55 = por %p53, %p54
    %p56 = scmp.ne.s32.totalorder %s45, %s46
    %p57 = scmp.eq.s32.totalorder %s25, 0
    %p58 = por %p56, %p57
    %p59 = scmp.ne.s32.totalorder %s45, %s46
    %p60 = scmp.eq.s32.totalorder %s26, 3
    %p61 = por %p59, %p60
    %p63 = scmp.ne.s32.totalorder %s46, %s62
    %p64 = scmp.eq.s32.totalorder %s26, 0
    %p65 = por %p63, %p64
    %s66 = ssub.s32 %s28, %s35
    %p67 = scmp.eq.s32.totalorder %s66, 0
    %s69 = sadd.s32 %s68, 1
    %s70 = scalar_select %p67, %s68, %s69
    %p73 = pneg %p67
    %p74 = scmp.eq.s32.totalorder %s20, 3
    %p75 = por %p73, %p74
    %p76 = scmp.ne.s32.totalorder %s68, %s71
    %p77 = scmp.eq.s32.totalorder %s20, 0
    %p78 = por %p76, %p77
    %p79 = scmp.ne.s32.totalorder %s68, %s71
    %p80 = scmp.eq.s32.totalorder %s25, 3
    %p81 = por %p79, %p80
    %p82 = scmp.ne.s32.totalorder %s71, %s72
    %p83 = scmp.eq.s32.totalorder %s25, 0
    %p84 = por %p82, %p83
    %p85 = scmp.ne.s32.totalorder %s71, %s72
    %p86 = scmp.eq.s32.totalorder %s26, 3
    %p87 = por %p85, %p86
    %p89 = scmp.ne.s32.totalorder %s72, %s88
    %p90 = scmp.eq.s32.totalorder %s26, 0
    %p91 = por %p89, %p90
    %s92 = ssub.s32 %s28, %s35
    %p93 = scmp.eq.s32.totalorder %s92, 0
    %s95 = sadd.s32 %s94, 1
    %s96 = scalar_select %p93, %s94, %s95
    %p99 = pneg %p93
    %p100 = scmp.eq.s32.totalorder %s20, 3
    %p101 = por %p99, %p100
    %p102 = scmp.ne.s32.totalorder %s94, %s97
    %p103 = scmp.eq.s32.totalorder %s20, 0
    %p104 = por %p102, %p103
    %p105 = scmp.ne.s32.totalorder %s94, %s97
    %p106 = scmp.eq.s32.totalorder %s25, 3
    %p107 = por %p105, %p106
    %p108 = scmp.ne.s32.totalorder %s97, %s98
    %p109 = scmp.eq.s32.totalorder %s25, 0
    %p110 = por %p108, %p109
    %p111 = scmp.ne.s32.totalorder %s97, %s98
    %p112 = scmp.eq.s32.totalorder %s26, 3
    %p113 = por %p111, %p112
    %p115 = scmp.ne.s32.totalorder %s98, %s114
    %p116 = scmp.eq.s32.totalorder %s26, 0
    %p117 = por %p115, %p116
    %s118 = ssub.s32 %s28, %s35
    %p119 = scmp.eq.s32.totalorder %s118, 0
    %s121 = sadd.s32 %s120, 1
    %s122 = scalar_select %p119, %s120, %s121
    %p125 = pneg %p119
    %p126 = scmp.eq.s32.totalorder %s20, 3
    %p127 = por %p125, %p126
    %p128 = scmp.ne.s32.totalorder %s120, %s123
    %p129 = scmp.eq.s32.totalorder %s20, 0
    %p130 = por %p128, %p129
    %p131 = scmp.ne.s32.totalorder %s120, %s123
    %p132 = scmp.eq.s32.totalorder %s25, 3
    %p133 = por %p131, %p132
    %p134 = scmp.ne.s32.totalorder %s123, %s124
    %p135 = scmp.eq.s32.totalorder %s25, 0
    %p136 = por %p134, %p135
    %p137 = scmp.ne.s32.totalorder %s123, %s124
    %p138 = scmp.eq.s32.totalorder %s26, 3
    %p139 = por %p137, %p138
    %p141 = scmp.ne.s32.totalorder %s124, %s140
    %p142 = scmp.eq.s32.totalorder %s26, 0
    %p143 = por %p141, %p142
    %s144 = ssub.s32 %s28, %s35
    %p145 = scmp.eq.s32.totalorder %s144, 0
    %s147 = sadd.s32 %s146, 1
    %s148 = scalar_select %p145, %s146, %s147
    %p151 = pneg %p145
    %p152 = scmp.eq.s32.totalorder %s20, 3
    %p153 = por %p151, %p152
    %p154 = scmp.ne.s32.totalorder %s146, %s149
    %p155 = scmp.eq.s32.totalorder %s20, 0
    %p156 = por %p154, %p155
    %p157 = scmp.ne.s32.totalorder %s146, %s149
    %p158 = scmp.eq.s32.totalorder %s25, 3
    %p159 = por %p157, %p158
    %p160 = scmp.ne.s32.totalorder %s149, %s150
    %p161 = scmp.eq.s32.totalorder %s25, 0
    %p162 = por %p160, %p161
    %p163 = scmp.ne.s32.totalorder %s149, %s150
    %p164 = scmp.eq.s32.totalorder %s26, 3
    %p165 = por %p163, %p164
    %p167 = scmp.ne.s32.totalorder %s150, %s166
    %p168 = scmp.eq.s32.totalorder %s26, 0
    %p169 = por %p167, %p168
    %s170 = ssub.s32 %s28, %s35
    %p171 = scmp.eq.s32.totalorder %s170, 0
    %s173 = sadd.s32 %s172, 1
    %s174 = scalar_select %p171, %s172, %s173
    %p177 = pneg %p171
    %p178 = scmp.eq.s32.totalorder %s20, 3
    %p179 = por %p177, %p178
    %p180 = scmp.ne.s32.totalorder %s172, %s175
    %p181 = scmp.eq.s32.totalorder %s20, 0
    %p182 = por %p180, %p181
    %p183 = scmp.ne.s32.totalorder %s172, %s175
    %p184 = scmp.eq.s32.totalorder %s25, 3
    %p185 = por %p183, %p184
    %p186 = scmp.ne.s32.totalorder %s175, %s176
    %p187 = scmp.eq.s32.totalorder %s25, 0
    %p188 = por %p186, %p187
    %p189 = scmp.ne.s32.totalorder %s175, %s176
    %p190 = scmp.eq.s32.totalorder %s26, 3
    %p191 = por %p189, %p190
    %p193 = scmp.ne.s32.totalorder %s176, %s192
    %p194 = scmp.eq.s32.totalorder %s26, 0
    %p195 = por %p193, %p194
    %s196 = ssub.s32 %s28, %s35
    %p197 = scmp.eq.s32.totalorder %s196, 0
    %s199 = sadd.s32 %s198, 1
    %s200 = scalar_select %p197, %s198, %s199
    %p203 = pneg %p197
    %p204 = scmp.eq.s32.totalorder %s20, 3
    %p205 = por %p203, %p204
    %p206 = scmp.ne.s32.totalorder %s198, %s201
    %p207 = scmp.eq.s32.totalorder %s20, 0
    %p208 = por %p206, %p207
    %p209 = scmp.ne.s32.totalorder %s198, %s201
    %p210 = scmp.eq.s32.totalorder %s25, 3
    %p211 = por %p209, %p210
    %p212 = scmp.ne.s32.totalorder %s201, %s202
    %p213 = scmp.eq.s32.totalorder %s25, 0
    %p214 = por %p212, %p213
    %p215 = scmp.ne.s32.totalorder %s201, %s202
    %p216 = scmp.eq.s32.totalorder %s26, 3
    %p217 = por %p215, %p216
    %p219 = scmp.ne.s32.totalorder %s202, %s218
    %p220 = scmp.eq.s32.totalorder %s26, 0
    %p221 = por %p219, %p220
    %s222 = ssub.s32 %s28, %s35
    %p223 = scmp.eq.s32.totalorder %s222, 0
    %s225 = sadd.s32 %s224, 1
    %s226 = scalar_select %p223, %s224, %s225
    %p229 = pneg %p223
    %p230 = scmp.eq.s32.totalorder %s20, 3
    %p231 = por %p229, %p230
    %p232 = scmp.ne.s32.totalorder %s224, %s227
    %p233 = scmp.eq.s32.totalorder %s20, 0
    %p234 = por %p232, %p233
    %p235 = scmp.ne.s32.totalorder %s224, %s227
    %p236 = scmp.eq.s32.totalorder %s25, 3
    %p237 = por %p235, %p236
    %p238 = scmp.ne.s32.totalorder %s227, %s228
    %p239 = scmp.eq.s32.totalorder %s25, 0
    %p240 = por %p238, %p239
    %p241 = scmp.ne.s32.totalorder %s227, %s228
    %p242 = scmp.eq.s32.totalorder %s26, 3
    %p243 = por %p241, %p242
    %p245 = scmp.ne.s32.totalorder %s228, %s244
    %p246 = scmp.eq.s32.totalorder %s26, 0
    %p247 = por %p245, %p246
    %s248 = ssub.s32 %s28, %s35
    %p249 = scmp.eq.s32.totalorder %s248, 0
    %s251 = sadd.s32 %s250, 1
    %s252 = scalar_select %p249, %s250, %s251
    %p255 = pneg %p249
    %p256 = scmp.eq.s32.totalorder %s20, 3
    %p257 = por %p255, %p256
    %p258 = scmp.ne.s32.totalorder %s250, %s253
    %p259 = scmp.eq.s32.totalorder %s20, 0
    %p260 = por %p258, %p259
    %p261 = scmp.ne.s32.totalorder %s250, %s253
    %p262 = scmp.eq.s32.totalorder %s25, 3
    %p263 = por %p261, %p262
    %p264 = scmp.ne.s32.totalorder %s253, %s254
    %p265 = scmp.eq.s32.totalorder %s25, 0
    %p266 = por %p264, %p265
    %p267 = scmp.ne.s32.totalorder %s253, %s254
    %p268 = scmp.eq.s32.totalorder %s26, 3
    %p269 = por %p267, %p268
    %p271 = scmp.ne.s32.totalorder %s254, %s270
    %p272 = scmp.eq.s32.totalorder %s26, 0
    %p273 = por %p271, %p272
    %s274 = ssub.s32 %s28, %s35
    %p275 = scmp.eq.s32.totalorder %s274, 0
    %s277 = sadd.s32 %s276, 1
    %s278 = scalar_select %p275, %s276, %s277
    %p281 = pneg %p275
    %p282 = scmp.eq.s32.totalorder %s20, 3
    %p283 = por %p281, %p282
    %p284 = scmp.ne.s32.totalorder %s276, %s279
    %p285 = scmp.eq.s32.totalorder %s20, 0
    %p286 = por %p284, %p285
    %p287 = scmp.ne.s32.totalorder %s276, %s279
    %p288 = scmp.eq.s32.totalorder %s25, 3
    %p289 = por %p287, %p288
    %p290 = scmp.ne.s32.totalorder %s279, %s280
    %p291 = scmp.eq.s32.totalorder %s25, 0
    %p292 = por %p290, %p291
    %p293 = scmp.ne.s32.totalorder %s279, %s280
    %p294 = scmp.eq.s32.totalorder %s26, 3
    %p295 = por %p293, %p294
    %p297 = scmp.ne.s32.totalorder %s280, %s296
    %p298 = scmp.eq.s32.totalorder %s26, 0
    %p299 = por %p297, %p298
    %s300 = ssub.s32 %s28, %s35
    %p301 = scmp.eq.s32.totalorder %s300, 0
    %s303 = sadd.s32 %s302, 1
    %s304 = scalar_select %p301, %s302, %s303
    %p307 = pneg %p301
    %p308 = scmp.eq.s32.totalorder %s20, 3
    %p309 = por %p307, %p308
    %p310 = scmp.ne.s32.totalorder %s302, %s305
    %p311 = scmp.eq.s32.totalorder %s20, 0
    %p312 = por %p310, %p311
    %p313 = scmp.ne.s32.totalorder %s302, %s305
    %p314 = scmp.eq.s32.totalorder %s25, 3
    %p315 = por %p313, %p314
    %p316 = scmp.ne.s32.totalorder %s305, %s306
    %p317 = scmp.eq.s32.totalorder %s25, 0
    %p318 = por %p316, %p317
    %p319 = scmp.ne.s32.totalorder %s305, %s306
    %p320 = scmp.eq.s32.totalorder %s26, 3
    %p321 = por %p319, %p320
    %p323 = scmp.ne.s32.totalorder %s306, %s322
    %p324 = scmp.eq.s32.totalorder %s26, 0
    %p325 = por %p323, %p324
    %s326 = ssub.s32 %s28, %s35
    %p327 = scmp.eq.s32.totalorder %s326, 0
    %s329 = sadd.s32 %s328, 1
    %s330 = scalar_select %p327, %s328, %s329
    %p333 = pneg %p327
    %p334 = scmp.eq.s32.totalorder %s20, 3
    %p335 = por %p333, %p334
    %p336 = scmp.ne.s32.totalorder %s328, %s331
    %p337 = scmp.eq.s32.totalorder %s20, 0
    %p338 = por %p336, %p337
    %p339 = scmp.ne.s32.totalorder %s328, %s331
    %p340 = scmp.eq.s32.totalorder %s25, 3
    %p341 = por %p339, %p340
    %p342 = scmp.ne.s32.totalorder %s331, %s332
    %p343 = scmp.eq.s32.totalorder %s25, 0
    %p344 = por %p342, %p343
    %p345 = scmp.ne.s32.totalorder %s331, %s332
    %p346 = scmp.eq.s32.totalorder %s26, 3
    %p347 = por %p345, %p346
    %p349 = scmp.ne.s32.totalorder %s332, %s348
    %p350 = scmp.eq.s32.totalorder %s26, 0
    %p351 = por %p349, %p350
    %s353 = sadd.s32 %s352, 1
    %p356 = scmp.eq.s32.totalorder %s20, 3
    %p357 = scmp.ne.s32.totalorder %s352, %s354
    %p358 = scmp.eq.s32.totalorder %s20, 0
    %p359 = por %p357, %p358
    %p360 = scmp.ne.s32.totalorder %s352, %s354
    %p361 = scmp.eq.s32.totalorder %s25, 3
    %p362 = por %p360, %p361
    %p363 = scmp.ne.s32.totalorder %s354, %s355
    %p364 = scmp.eq.s32.totalorder %s25, 0
    %p365 = por %p363, %p364
    %p366 = scmp.ne.s32.totalorder %s354, %s355
    %p367 = scmp.eq.s32.totalorder %s26, 3
    %p368 = por %p366, %p367
    %p370 = scmp.ne.s32.totalorder %s355, %s369
    %p371 = scmp.eq.s32.totalorder %s26, 0
    %p372 = por %p370, %p371
    %s374 = sadd.s32 %s373, 1
    %p377 = scmp.eq.s32.totalorder %s20, 3
    %p378 = scmp.ne.s32.totalorder %s373, %s375
    %p379 = scmp.eq.s32.totalorder %s20, 0
    %p380 = por %p378, %p379
    %p381 = scmp.ne.s32.totalorder %s373, %s375
    %p382 = scmp.eq.s32.totalorder %s25, 3
    %p383 = por %p381, %p382
    %p384 = scmp.ne.s32.totalorder %s375, %s376
    %p385 = scmp.eq.s32.totalorder %s25, 0
    %p386 = por %p384, %p385
    %p387 = scmp.ne.s32.totalorder %s375, %s376
    %p388 = scmp.eq.s32.totalorder %s26, 3
    %p389 = por %p387, %p388
    %p391 = scmp.ne.s32.totalorder %s376, %s390
    %p392 = scmp.eq.s32.totalorder %s26, 0
    %p393 = por %p391, %p392
    %s394 = ssub.s32 %s27, %s39
    %p395 = scmp.eq.s32.totalorder %s394, 0
    %s397 = sadd.s32 %s396, 1
    %s398 = scalar_select %p395, %s396, %s397
    %p401 = pneg %p395
    %p402 = scmp.eq.s32.totalorder %s20, 3
    %p403 = por %p401, %p402
    %p404 = scmp.ne.s32.totalorder %s396, %s399
    %p405 = scmp.eq.s32.totalorder %s20, 0
    %p406 = por %p404, %p405
    %p407 = scmp.ne.s32.totalorder %s396, %s399
    %p408 = scmp.eq.s32.totalorder %s25, 3
    %p409 = por %p407, %p408
    %p410 = scmp.ne.s32.totalorder %s399, %s400
    %p411 = scmp.eq.s32.totalorder %s25, 0
    %p412 = por %p410, %p411
    %p413 = scmp.ne.s32.totalorder %s399, %s400
    %p414 = scmp.eq.s32.totalorder %s26, 3
    %p415 = por %p413, %p414
    %p417 = scmp.ne.s32.totalorder %s400, %s416
    %p418 = scmp.eq.s32.totalorder %s26, 0
    %p419 = por %p417, %p418
    %p420 = scmp.le.s32.totalorder 1, %s20
    %p421 = scmp.lt.s32.totalorder %s20, 5
    %p422 = pnand %p420, %p421
    %p423 = pneg %p422
    // Predicated region
    $region9: #{transformer_forward.2} parent=5 // pred_check
      _
    $region10: #{transformer_forward.2} parent=5 // pred_check_branch
      %425 = sbr.rel (%p422) target = $region12
    $region11: #{transformer_forward.2} parent=5 // pred_region
      %s426 = ssub.s32 %s20, 1
      // Predicated region
      $region13: #{transformer_forward.2} parent=11 // pred_check
        %p427 = pneg %p365
      $region14: #{transformer_forward.2} parent=11 // pred_check_branch
        %429 = sbr.rel (%p427) target = $region16
      $region15: #{transformer_forward.2} parent=11 // pred_region
        _
      $region16: #{transformer_forward.2} parent=11 // pred_fallthru
        _
      // Predicated region
      $region17: #{transformer_forward.2} parent=11 // pred_check
        %p430 = pneg %p386
      $region18: #{transformer_forward.2} parent=11 // pred_check_branch
        %432 = sbr.rel (%p430) target = $region20
      $region19: #{transformer_forward.2} parent=11 // pred_region
        _
      $region20: #{transformer_forward.2} parent=11 // pred_fallthru
        _
    $region12: #{transformer_forward.2} parent=5 // pred_fallthru
      _
    %p433 = scmp.lt.s32.totalorder %s20, 4
    // Predicated region
    $region21: #{transformer_forward.2} parent=5 // pred_check
      %p434 = pneg %p433
    $region22: #{transformer_forward.2} parent=5 // pred_check_branch
      %436 = sbr.rel (%p434) target = $region24
    $region23: #{transformer_forward.2} parent=5 // pred_region
      // Predicated region
      $region25: #{transformer_forward.2} parent=23 // pred_check
        %p437 = pneg %p52
      $region26: #{transformer_forward.2} parent=23 // pred_check_branch
        %439 = sbr.rel (%p437) target = $region28
      $region27: #{transformer_forward.2} parent=23 // pred_region
        %p440 = scmp.lt.s32.totalorder %s27, 1
        %s441 = scalar_select %p440, %s27, 1
        %s442 = smul.addr %s441, 8
        %s443 = scalar_lea.vmem %s0, %s442
      $region28: #{transformer_forward.2} parent=23 // pred_fallthru
        _
      // Predicated region
      $region29: #{transformer_forward.2} parent=23 // pred_check
        %p444 = pneg %p78
      $region30: #{transformer_forward.2} parent=23 // pred_check_branch
        %446 = sbr.rel (%p444) target = $region32
      $region31: #{transformer_forward.2} parent=23 // pred_region
        %p447 = scmp.lt.s32.totalorder %s28, 1
        %s448 = scalar_select %p447, %s28, 1
        %s449 = scalar_lea.vmem %s1, %s448
      $region32: #{transformer_forward.2} parent=23 // pred_fallthru
        _
      // Predicated region
      $region33: #{transformer_forward.2} parent=23 // pred_check
        %p450 = pneg %p104
      $region34: #{transformer_forward.2} parent=23 // pred_check_branch
        %452 = sbr.rel (%p450) target = $region36
      $region35: #{transformer_forward.2} parent=23 // pred_region
        %p453 = scmp.lt.s32.totalorder %s28, 1
        %s454 = scalar_select %p453, %s28, 1
        %s455 = scalar_lea.vmem %s2, %s454
      $region36: #{transformer_forward.2} parent=23 // pred_fallthru
        _
      // Predicated region
      $region37: #{transformer_forward.2} parent=23 // pred_check
        %p456 = pneg %p130
      $region38: #{transformer_forward.2} parent=23 // pred_check_branch
        %458 = sbr.rel (%p456) target = $region40
      $region39: #{transformer_forward.2} parent=23 // pred_region
        %p459 = scmp.lt.s32.totalorder %s28, 1
        %s460 = scalar_select %p459, %s28, 1
        %s461 = smul.addr %s460, 4
        %s462 = smul.addr %s461, 4
        %s463 = scalar_lea.vmem %s3, %s462
      $region40: #{transformer_forward.2} parent=23 // pred_fallthru
        _
      // Predicated region
      $region41: #{transformer_forward.2} parent=23 // pred_check
        %p464 = pneg %p156
      $region42: #{transformer_forward.2} parent=23 // pred_check_branch
        %466 = sbr.rel (%p464) target = $region44
      $region43: #{transformer_forward.2} parent=23 // pred_region
        %p467 = scmp.lt.s32.totalorder %s28, 1
        %s468 = scalar_select %p467, %s28, 1
        %s469 = smul.addr %s468, 4
        %s470 = smul.addr %s469, 4
        %s471 = scalar_lea.vmem %s4, %s470
      $region44: #{transformer_forward.2} parent=23 // pred_fallthru
        _
      // Predicated region
      $region45: #{transformer_forward.2} parent=23 // pred_check
        %p472 = pneg %p182
      $region46: #{transformer_forward.2} parent=23 // pred_check_branch
        %474 = sbr.rel (%p472) target = $region48
      $region47: #{transformer_forward.2} parent=23 // pred_region
        %p475 = scmp.lt.s32.totalorder %s28, 1
        %s476 = scalar_select %p475, %s28, 1
        %s477 = scalar_lea.vmem %s5, %s476
      $region48: #{transformer_forward.2} parent=23 // pred_fallthru
        _
      // Predicated region
      $region49: #{transformer_forward.2} parent=23 // pred_check
        %p478 = pneg %p208
      $region50: #{transformer_forward.2} parent=23 // pred_check_branch
        %480 = sbr.rel (%p478) target = $region52
      $region51: #{transformer_forward.2} parent=23 // pred_region
        %p481 = scmp.lt.s32.totalorder %s28, 1
        %s482 = scalar_select %p481, %s28, 1
        %s483 = scalar_lea.vmem %s6, %s482
      $region52: #{transformer_forward.2} parent=23 // pred_fallthru
        _
      // Predicated region
      $region53: #{transformer_forward.2} parent=23 // pred_check
        %p484 = pneg %p234
      $region54: #{transformer_forward.2} parent=23 // pred_check_branch
        %486 = sbr.rel (%p484) target = $region56
      $region55: #{transformer_forward.2} parent=23 // pred_region
        %p487 = scmp.lt.s32.totalorder %s28, 1
        %s488 = scalar_select %p487, %s28, 1
        %s489 = scalar_lea.vmem %s7, %s488
      $region56: #{transformer_forward.2} parent=23 // pred_fallthru
        _
      // Predicated region
      $region57: #{transformer_forward.2} parent=23 // pred_check
        %p490 = pneg %p260
      $region58: #{transformer_forward.2} parent=23 // pred_check_branch
        %492 = sbr.rel (%p490) target = $region60
      $region59: #{transformer_forward.2} parent=23 // pred_region
        %p493 = scmp.lt.s32.totalorder %s28, 1
        %s494 = scalar_select %p493, %s28, 1
        %s495 = smul.addr %s494, 4
        %s496 = smul.addr %s495, 4
        %s497 = scalar_lea.vmem %s8, %s496
      $region60: #{transformer_forward.2} parent=23 // pred_fallthru
        _
      // Predicated region
      $region61: #{transformer_forward.2} parent=23 // pred_check
        %p498 = pneg %p286
      $region62: #{transformer_forward.2} parent=23 // pred_check_branch
        %500 = sbr.rel (%p498) target = $region64
      $region63: #{transformer_forward.2} parent=23 // pred_region
        %p501 = scmp.lt.s32.totalorder %s28, 1
        %s502 = scalar_select %p501, %s28, 1
        %s503 = scalar_lea.vmem %s9, %s502
      $region64: #{transformer_forward.2} parent=23 // pred_fallthru
        _
      // Predicated region
      $region65: #{transformer_forward.2} parent=23 // pred_check
        %p504 = pneg %p312
      $region66: #{transformer_forward.2} parent=23 // pred_check_branch
        %506 = sbr.rel (%p504) target = $region68
      $region67: #{transformer_forward.2} parent=23 // pred_region
        %p507 = scmp.lt.s32.totalorder %s28, 1
        %s508 = scalar_select %p507, %s28, 1
        %s509 = smul.addr %s508, 16
        %s510 = smul.addr %s509, 4
        %s511 = scalar_lea.vmem %s10, %s510
      $region68: #{transformer_forward.2} parent=23 // pred_fallthru
        _
      // Predicated region
      $region69: #{transformer_forward.2} parent=23 // pred_check
        %p512 = pneg %p338
      $region70: #{transformer_forward.2} parent=23 // pred_check_branch
        %514 = sbr.rel (%p512) target = $region72
      $region71: #{transformer_forward.2} parent=23 // pred_region
        %p515 = scmp.lt.s32.totalorder %s28, 1
        %s516 = scalar_select %p515, %s28, 1
        %s517 = scalar_lea.vmem %s11, %s516
      $region72: #{transformer_forward.2} parent=23 // pred_fallthru
        _
    $region24: #{transformer_forward.2} parent=5 // pred_fallthru
      _
    %p518 = scmp.le.s32.totalorder 1, %s20
    %p519 = scmp.lt.s32.totalorder %s20, 5
    %p520 = pnand %p518, %p519
    %p521 = pneg %p520
    // Predicated region
    $region73: #{transformer_forward.2} parent=5 // pred_check
      _
    $region74: #{transformer_forward.2} parent=5 // pred_check_branch
      %523 = sbr.rel (%p520) target = $region76
    $region75: #{transformer_forward.2} parent=5 // pred_region
      %s524 = ssub.s32 %s20, 1
      %p525 = scmp.lt.s32.totalorder %s29, 1
      %s526 = scalar_select %p525, %s29, 1
      %s527 = smul.addr %s526, 8
      %s528 = scalar_lea.vmem %s0, %s527
      %p529 = pneg %p58
      %p530 = pneg %p55
      %p531 = scmp.lt.s32.totalorder %s30, 1
      %s532 = scalar_select %p531, %s30, 1
      %s533 = scalar_lea.vmem %s1, %s532
      %p534 = pneg %p84
      %p535 = pneg %p81
      %p536 = scmp.lt.s32.totalorder %s30, 1
      %s537 = scalar_select %p536, %s30, 1
      %s538 = scalar_lea.vmem %s2, %s537
      %p539 = pneg %p110
      %p540 = pneg %p107
      %p541 = scmp.lt.s32.totalorder %s30, 1
      %s542 = scalar_select %p541, %s30, 1
      %s543 = smul.addr %s542, 4
      %s544 = smul.addr %s543, 4
      %s545 = scalar_lea.vmem %s3, %s544
      %p546 = pneg %p136
      %p547 = pneg %p133
      %p548 = scmp.lt.s32.totalorder %s30, 1
      %s549 = scalar_select %p548, %s30, 1
      %s550 = smul.addr %s549, 4
      %s551 = smul.addr %s550, 4
      %s552 = scalar_lea.vmem %s4, %s551
      %p553 = pneg %p162
      %p554 = pneg %p159
      %p555 = scmp.lt.s32.totalorder %s30, 1
      %s556 = scalar_select %p555, %s30, 1
      %s557 = scalar_lea.vmem %s5, %s556
      %p558 = pneg %p188
      %p559 = pneg %p185
      %p560 = scmp.lt.s32.totalorder %s30, 1
      %s561 = scalar_select %p560, %s30, 1
      %s562 = scalar_lea.vmem %s6, %s561
      %p563 = pneg %p214
      %p564 = pneg %p211
      %p565 = scmp.lt.s32.totalorder %s30, 1
      %s566 = scalar_select %p565, %s30, 1
      %s567 = scalar_lea.vmem %s7, %s566
      %p568 = pneg %p240
      %p569 = pneg %p237
      %p570 = scmp.lt.s32.totalorder %s30, 1
      %s571 = scalar_select %p570, %s30, 1
      %s572 = smul.addr %s571, 4
      %s573 = smul.addr %s572, 4
      %s574 = scalar_lea.vmem %s8, %s573
      %p575 = pneg %p266
      %p576 = pneg %p263
      %p577 = scmp.lt.s32.totalorder %s30, 1
      %s578 = scalar_select %p577, %s30, 1
      %s579 = scalar_lea.vmem %s9, %s578
      %p580 = pneg %p292
      %p581 = pneg %p289
      %p582 = scmp.lt.s32.totalorder %s30, 1
      %s583 = scalar_select %p582, %s30, 1
      %s584 = smul.addr %s583, 16
      %s585 = smul.addr %s584, 4
      %s586 = scalar_lea.vmem %s10, %s585
      %p587 = pneg %p318
      %p588 = pneg %p315
      %p589 = scmp.lt.s32.totalorder %s30, 1
      %s590 = scalar_select %p589, %s30, 1
      %s591 = scalar_lea.vmem %s11, %s590
      %p592 = pneg %p344
      %p593 = pneg %p341
      %p594 = pneg %p365
      %p595 = pneg %p362
      %p596 = pneg %p386
      %p597 = pneg %p383
      %p598 = pneg %p412
      %p599 = pneg %p409
      %p600 = scmp.lt.s32.totalorder %s29, 1
      %s601 = scalar_select %p600, %s29, 1
      %s602 = smul.addr %s601, 4
      %s603 = scalar_lea.vmem %s14, %s602
      %p604 = scmp.lt.s32.totalorder %s29, 1
      %s605 = scalar_select %p604, %s29, 1
      %s606 = smul.addr %s605, 8
      %s607 = scalar_lea.vmem %s0, %s606
      %p608 = scmp.lt.s32.totalorder %s30, 1
      %s609 = scalar_select %p608, %s30, 1
      %s610 = scalar_lea.vmem %s1, %s609
      %p611 = scmp.lt.s32.totalorder %s30, 1
      %s612 = scalar_select %p611, %s30, 1
      %s613 = scalar_lea.vmem %s2, %s612
      %p614 = scmp.lt.s32.totalorder %s30, 1
      %s615 = scalar_select %p614, %s30, 1
      %s616 = smul.addr %s615, 4
      %s617 = smul.addr %s616, 4
      %s618 = scalar_lea.vmem %s3, %s617
      %p619 = scmp.lt.s32.totalorder %s30, 1
      %s620 = scalar_select %p619, %s30, 1
      %s621 = smul.addr %s620, 4
      %s622 = smul.addr %s621, 4
      %s623 = scalar_lea.vmem %s4, %s622
      %p624 = scmp.lt.s32.totalorder %s30, 1
      %s625 = scalar_select %p624, %s30, 1
      %s626 = scalar_lea.vmem %s5, %s625
      %p627 = scmp.lt.s32.totalorder %s30, 1
      %s628 = scalar_select %p627, %s30, 1
      %s629 = scalar_lea.vmem %s6, %s628
      %p630 = scmp.lt.s32.totalorder %s30, 1
      %s631 = scalar_select %p630, %s30, 1
      %s632 = scalar_lea.vmem %s7, %s631
      %p633 = scmp.lt.s32.totalorder %s30, 1
      %s634 = scalar_select %p633, %s30, 1
      %s635 = smul.addr %s634, 4
      %s636 = smul.addr %s635, 4
      %s637 = scalar_lea.vmem %s8, %s636
      %p638 = scmp.lt.s32.totalorder %s30, 1
      %s639 = scalar_select %p638, %s30, 1
      %s640 = scalar_lea.vmem %s9, %s639
      %p641 = scmp.lt.s32.totalorder %s30, 1
      %s642 = scalar_select %p641, %s30, 1
      %s643 = smul.addr %s642, 16
      %s644 = smul.addr %s643, 4
      %s645 = scalar_lea.vmem %s10, %s644
      %p646 = scmp.lt.s32.totalorder %s30, 1
      %s647 = scalar_select %p646, %s30, 1
      %s648 = scalar_lea.vmem %s11, %s647
      %p649 = scmp.lt.s32.totalorder %s29, 1
      %s650 = scalar_select %p649, %s29, 1
      %s651 = smul.addr %s650, 4
      %s652 = scalar_lea.vmem %s14, %s651
      %p654 = scmp.eq.s32.totalorder %s30, 0
      // Predicated region
      $region77: #{transformer_forward.2} parent=75 // pred_check
        %p655 = pneg %p654
      $region78: #{transformer_forward.2} parent=75 // pred_check_branch
        %657 = sbr.rel (%p655) target = $region80
      $region79: #{transformer_forward.2} parent=75 // pred_region
        %v658 = vld [vmem:[%s607] sm:$0xff]
        %vm659 = vcmask 261120
        %660 = vst.msk [vmem:[#allocation2] sm:$0xff] %vm659, %v658
      $region80: #{transformer_forward.2} parent=75 // pred_fallthru
        _
      %v661 = vld [vmem:[#allocation2] sm:$0xff]
      %v662 = vld [vmem:[%s610] sm:$0x1]
      %v663 = vld [vmem:[%s613] sm:$0x1]
      %vm664 = vcmask 261120
      %v665 = vsel %vm664, %v661, 0.0
      %666 = vadd.xlane.f32.xlu0 %v665
      %v667 = vpop.xlane.xlu0 %666
      %v668 = vrcp.pop 32.0
      %v669 = vmul.f32 %v667, %v668
      %v670 = vsub.f32 %v661, %v669
      %v671 = vmul.f32 %v670, %v670
      %v672 = vsel %vm664, %v671, 0.0
      %673 = vadd.xlane.f32.xlu0 %v672
      %v674 = vpop.xlane.xlu0 %673
      %v675 = vmul.f32 %v674, %v668
      %v676 = vadd.f32 %v675, 1e-05
      %v677 = vrsqrt.pop %v676
      %v678 = vmul.f32 %v670, %v677
      %v680 = vlaneseq
      %v681 = vshrl.u32 %v680, 7
      %v682 = vsub.s32 0, %v681
      %v683 = vrot.slane %v662, %v682
      %v685 = vmul.f32 %v678, %v683
      %v687 = vlaneseq
      %v688 = vshrl.u32 %v687, 7
      %v689 = vsub.s32 0, %v688
      %v690 = vrot.slane %v663, %v689
      %v692 = vadd.f32 %v685, %v690
      %v693 = vpack.c.bf16 %v692, %v692
      %v694 = vld [vmem:[%s618] sm:$0xf]
      %v695 = vld [vmem:[%s618 + $0x4] sm:$0xf]
      %v696 = vld [vmem:[%s618 + $0x8] sm:$0xf]
      %v697 = vld [vmem:[%s618 + $0xc] sm:$0xf]
      %v702 = vunpack.c.l.b16 %v694
      %v703 = vunpack.c.l.b16 %v695
      %v704 = vunpack.c.l.b16 %v696
      %v705 = vunpack.c.l.b16 %v697
      %v706 = vpack.c.b16 %v703, %v702
      %v707 = vpack.c.b16 %v705, %v704
      %v711 = vsel %vm664, %v693, 0
      %713 = vmatprep.subr.bf16.mxu0 0
      %714 = vmatpush1.bf16.msra.mxu0 %v706
      %715 = vmatprep.subr.bf16.mxu0 0
      %716 = vmatpush1.bf16.msra.mxu0 %v707
      %717 = vmatprep.subr.bf16.mxu0 0
      %718 = vmatpush1.bf16.msra.mxu0 0
      %719 = vmatprep.subr.bf16.mxu0 0
      %720 = vmatpush1.bf16.msra.mxu0 0
      %721 = vmatprep.subr.bf16.mxu0 0
      %722 = vmatpush1.bf16.msra.mxu0 0
      %723 = vmatprep.subr.bf16.mxu0 0
      %724 = vmatpush1.bf16.msra.mxu0 0
      %725 = vmatprep.subr.bf16.mxu0 0
      %726 = vmatpush1.bf16.msra.mxu0 0
      %727 = vmatprep.subr.bf16.mxu0 0
      %728 = vmatpush1.bf16.msra.mxu0 0
      %729 = vmatprep.subr.bf16.mxu0 0
      %730 = vmatpush1.bf16.msra.mxu0 0
      %731 = vmatprep.subr.bf16.mxu0 0
      %732 = vmatpush1.bf16.msra.mxu0 0
      %733 = vmatprep.subr.bf16.mxu0 0
      %734 = vmatpush1.bf16.msra.mxu0 0
      %735 = vmatprep.subr.bf16.mxu0 0
      %736 = vmatpush1.bf16.msra.mxu0 0
      %737 = vmatprep.subr.bf16.mxu0 0
      %738 = vmatpush1.bf16.msra.mxu0 0
      %739 = vmatprep.subr.bf16.mxu0 0
      %740 = vmatpush1.bf16.msra.mxu0 0
      %741 = vmatprep.subr.bf16.mxu0 0
      %742 = vmatpush1.bf16.msra.mxu0 0
      %743 = vmatprep.subr.bf16.mxu0 0
      %744 = vmatpush1.bf16.msra.mxu0 0
      %745 = vmatprep.mubr.bf16.mxu0 0
      %746 = vmatmul.mubr.bf16.gmra.mrb[0].mxu0 %v711
      %v747 = vpop.f32.mrb[0].mxu0
      %v748 = vadd.f32 0.0, %v747
      %v749 = vpop.f32.mrb[0].mxu0
      %v750 = vpop.f32.mrb[0].mxu0
      %v751 = vpop.f32.mrb[0].mxu0
      %752 = vdwg.mxu0
      %754 = vrot.lane.b32.xlu0 %v748, 120
      %v755 = vpop.permute.xlu0 %754
      %757 = vrot.lane.b32.xlu0 %v748, 112
      %v758 = vpop.permute.xlu0 %757
      %760 = vrot.lane.b32.xlu0 %v748, 104
      %v761 = vpop.permute.xlu0 %760
      %v763 = vpack.c.bf16 %v748, %v748
      %v764 = vpack.c.bf16 %v755, %v755
      %v765 = vpack.c.bf16 %v758, %v758
      %v766 = vpack.c.bf16 %v761, %v761
      %v767 = vlaneseq
      %v768 = vshrl.u32 %v767, 7
      %v769 = vlaneseq
      %v770 = vand.u32 %v769, 127
      %772 = vrot.lane.b32.xlu0 %v763, 96
      %v773 = vpop.permute.xlu0 %772
      %vm774 = vcmask 64512
      %v776 = vsel %vm774, %v763, 0
      %v779 = vsel %vm774, %v773, 0
      %781 = vmatprep.subr.bf16.mxu0 0
      %782 = vmatpush1.bf16.xpose.msra.mxu0 %v779
      %783 = vmatprep.subr.bf16.mxu0 0
      %784 = vmatpush1.bf16.xpose.msra.mxu0 0
      %785 = vmatprep.subr.bf16.mxu0 0
      %786 = vmatpush1.bf16.xpose.msra.mxu0 0
      %787 = vmatprep.subr.bf16.mxu0 0
      %788 = vmatpush1.bf16.xpose.msra.mxu0 0
      %789 = vmatprep.subr.bf16.mxu0 0
      %790 = vmatpush1.bf16.xpose.msra.mxu0 0
      %791 = vmatprep.subr.bf16.mxu0 0
      %792 = vmatpush1.bf16.xpose.msra.mxu0 0
      %793 = vmatprep.subr.bf16.mxu0 0
      %794 = vmatpush1.bf16.xpose.msra.mxu0 0
      %795 = vmatprep.subr.bf16.mxu0 0
      %796 = vmatpush1.bf16.xpose.msra.mxu0 0
      %797 = vmatprep.subr.bf16.mxu0 0
      %798 = vmatpush1.bf16.xpose.msra.mxu0 0
      %799 = vmatprep.subr.bf16.mxu0 0
      %800 = vmatpush1.bf16.xpose.msra.mxu0 0
      %801 = vmatprep.subr.bf16.mxu0 0
      %802 = vmatpush1.bf16.xpose.msra.mxu0 0
      %803 = vmatprep.subr.bf16.mxu0 0
      %804 = vmatpush1.bf16.xpose.msra.mxu0 0
      %805 = vmatprep.subr.bf16.mxu0 0
      %806 = vmatpush1.bf16.xpose.msra.mxu0 0
      %807 = vmatprep.subr.bf16.mxu0 0
      %808 = vmatpush1.bf16.xpose.msra.mxu0 0
      %809 = vmatprep.subr.bf16.mxu0 0
      %810 = vmatpush1.bf16.xpose.msra.mxu0 0
      %811 = vmatprep.subr.bf16.mxu0 0
      %812 = vmatpush1.bf16.xpose.msra.mxu0 0
      %813 = vmatprep.mubr.bf16.mxu0 0
      %814 = vmatmul.mubr.bf16.gmra.mrb[0].mxu0 %v776
      %v815 = vpop.f32.mrb[0].mxu0
      %v816 = vadd.f32 0.0, %v815
      %v817 = vpop.f32.mrb[0].mxu0
      %v818 = vpop.f32.mrb[0].mxu0
      %v819 = vpop.f32.mrb[0].mxu0
      %820 = vdwg.mxu0
      %822 = vrot.lane.b32.xlu0 %v764, 96
      %v823 = vpop.permute.xlu0 %822
      %v825 = vsel %vm774, %v764, 0
      %v828 = vsel %vm774, %v823, 0
      %830 = vmatprep.subr.bf16.mxu0 0
      %831 = vmatpush1.bf16.xpose.msra.mxu0 %v828
      %832 = vmatprep.subr.bf16.mxu0 0
      %833 = vmatpush1.bf16.xpose.msra.mxu0 0
      %834 = vmatprep.subr.bf16.mxu0 0
      %835 = vmatpush1.bf16.xpose.msra.mxu0 0
      %836 = vmatprep.subr.bf16.mxu0 0
      %837 = vmatpush1.bf16.xpose.msra.mxu0 0
      %838 = vmatprep.subr.bf16.mxu0 0
      %839 = vmatpush1.bf16.xpose.msra.mxu0 0
      %840 = vmatprep.subr.bf16.mxu0 0
      %841 = vmatpush1.bf16.xpose.msra.mxu0 0
      %842 = vmatprep.subr.bf16.mxu0 0
      %843 = vmatpush1.bf16.xpose.msra.mxu0 0
      %844 = vmatprep.subr.bf16.mxu0 0
      %845 = vmatpush1.bf16.xpose.msra.mxu0 0
      %846 = vmatprep.subr.bf16.mxu0 0
      %847 = vmatpush1.bf16.xpose.msra.mxu0 0
      %848 = vmatprep.subr.bf16.mxu0 0
      %849 = vmatpush1.bf16.xpose.msra.mxu0 0
      %850 = vmatprep.subr.bf16.mxu0 0
      %851 = vmatpush1.bf16.xpose.msra.mxu0 0
      %852 = vmatprep.subr.bf16.mxu0 0
      %853 = vmatpush1.bf16.xpose.msra.mxu0 0
      %854 = vmatprep.subr.bf16.mxu0 0
      %855 = vmatpush1.bf16.xpose.msra.mxu0 0
      %856 = vmatprep.subr.bf16.mxu0 0
      %857 = vmatpush1.bf16.xpose.msra.mxu0 0
      %858 = vmatprep.subr.bf16.mxu0 0
      %859 = vmatpush1.bf16.xpose.msra.mxu0 0
      %860 = vmatprep.subr.bf16.mxu0 0
      %861 = vmatpush1.bf16.xpose.msra.mxu0 0
      %862 = vmatprep.mubr.bf16.mxu0 0
      %863 = vmatmul.mubr.bf16.gmra.mrb[0].mxu0 %v825
      %v864 = vpop.f32.mrb[0].mxu0
      %v865 = vadd.f32 0.0, %v864
      %v866 = vpop.f32.mrb[0].mxu0
      %v867 = vpop.f32.mrb[0].mxu0
      %v868 = vpop.f32.mrb[0].mxu0
      %869 = vdwg.mxu0
      %871 = vrot.lane.b32.xlu0 %v765, 96
      %v872 = vpop.permute.xlu0 %871
      %v874 = vsel %vm774, %v765, 0
      %v877 = vsel %vm774, %v872, 0
      %879 = vmatprep.subr.bf16.mxu0 0
      %880 = vmatpush1.bf16.xpose.msra.mxu0 %v877
      %881 = vmatprep.subr.bf16.mxu0 0
      %882 = vmatpush1.bf16.xpose.msra.mxu0 0
      %883 = vmatprep.subr.bf16.mxu0 0
      %884 = vmatpush1.bf16.xpose.msra.mxu0 0
      %885 = vmatprep.subr.bf16.mxu0 0
      %886 = vmatpush1.bf16.xpose.msra.mxu0 0
      %887 = vmatprep.subr.bf16.mxu0 0
      %888 = vmatpush1.bf16.xpose.msra.mxu0 0
      %889 = vmatprep.subr.bf16.mxu0 0
      %890 = vmatpush1.bf16.xpose.msra.mxu0 0
      %891 = vmatprep.subr.bf16.mxu0 0
      %892 = vmatpush1.bf16.xpose.msra.mxu0 0
      %893 = vmatprep.subr.bf16.mxu0 0
      %894 = vmatpush1.bf16.xpose.msra.mxu0 0
      %895 = vmatprep.subr.bf16.mxu0 0
      %896 = vmatpush1.bf16.xpose.msra.mxu0 0
      %897 = vmatprep.subr.bf16.mxu0 0
      %898 = vmatpush1.bf16.xpose.msra.mxu0 0
      %899 = vmatprep.subr.bf16.mxu0 0
      %900 = vmatpush1.bf16.xpose.msra.mxu0 0
      %901 = vmatprep.subr.bf16.mxu0 0
      %902 = vmatpush1.bf16.xpose.msra.mxu0 0
      %903 = vmatprep.subr.bf16.mxu0 0
      %904 = vmatpush1.bf16.xpose.msra.mxu0 0
      %905 = vmatprep.subr.bf16.mxu0 0
      %906 = vmatpush1.bf16.xpose.msra.mxu0 0
      %907 = vmatprep.subr.bf16.mxu0 0
      %908 = vmatpush1.bf16.xpose.msra.mxu0 0
      %909 = vmatprep.subr.bf16.mxu0 0
      %910 = vmatpush1.bf16.xpose.msra.mxu0 0
      %911 = vmatprep.mubr.bf16.mxu0 0
      %912 = vmatmul.mubr.bf16.gmra.mrb[0].mxu0 %v874
      %v913 = vpop.f32.mrb[0].mxu0
      %v914 = vadd.f32 0.0, %v913
      %v915 = vpop.f32.mrb[0].mxu0
      %v916 = vpop.f32.mrb[0].mxu0
      %v917 = vpop.f32.mrb[0].mxu0
      %918 = vdwg.mxu0
      %920 = vrot.lane.b32.xlu0 %v766, 96
      %v921 = vpop.permute.xlu0 %920
      %v923 = vsel %vm774, %v766, 0
      %v926 = vsel %vm774, %v921, 0
      %928 = vmatprep.subr.bf16.mxu0 0
      %929 = vmatpush1.bf16.xpose.msra.mxu0 %v926
      %930 = vmatprep.subr.bf16.mxu0 0
      %931 = vmatpush1.bf16.xpose.msra.mxu0 0
      %932 = vmatprep.subr.bf16.mxu0 0
      %933 = vmatpush1.bf16.xpose.msra.mxu0 0
      %934 = vmatprep.subr.bf16.mxu0 0
      %935 = vmatpush1.bf16.xpose.msra.mxu0 0
      %936 = vmatprep.subr.bf16.mxu0 0
      %937 = vmatpush1.bf16.xpose.msra.mxu0 0
      %938 = vmatprep.subr.bf16.mxu0 0
      %939 = vmatpush1.bf16.xpose.msra.mxu0 0
      %940 = vmatprep.subr.bf16.mxu0 0
      %941 = vmatpush1.bf16.xpose.msra.mxu0 0
      %942 = vmatprep.subr.bf16.mxu0 0
      %943 = vmatpush1.bf16.xpose.msra.mxu0 0
      %944 = vmatprep.subr.bf16.mxu0 0
      %945 = vmatpush1.bf16.xpose.msra.mxu0 0
      %946 = vmatprep.subr.bf16.mxu0 0
      %947 = vmatpush1.bf16.xpose.msra.mxu0 0
      %948 = vmatprep.subr.bf16.mxu0 0
      %949 = vmatpush1.bf16.xpose.msra.mxu0 0
      %950 = vmatprep.subr.bf16.mxu0 0
      %951 = vmatpush1.bf16.xpose.msra.mxu0 0
      %952 = vmatprep.subr.bf16.mxu0 0
      %953 = vmatpush1.bf16.xpose.msra.mxu0 0
      %954 = vmatprep.subr.bf16.mxu0 0
      %955 = vmatpush1.bf16.xpose.msra.mxu0 0
      %956 = vmatprep.subr.bf16.mxu0 0
      %957 = vmatpush1.bf16.xpose.msra.mxu0 0
      %958 = vmatprep.subr.bf16.mxu0 0
      %959 = vmatpush1.bf16.xpose.msra.mxu0 0
      %960 = vmatprep.mubr.bf16.mxu0 0
      %961 = vmatmul.mubr.bf16.gmra.mrb[0].mxu0 %v923
      %v962 = vpop.f32.mrb[0].mxu0
      %v963 = vadd.f32 0.0, %v962
      %v964 = vpop.f32.mrb[0].mxu0
      %v965 = vpop.f32.mrb[0].mxu0
      %v966 = vpop.f32.mrb[0].mxu0
      %967 = vdwg.mxu0
      %vm968 = vcmp.le.s32.totalorder %v770, %v768
      %v969 = vsel %vm968, %v816, -inf
      %v970 = vsel %vm968, %v865, -inf
      %v971 = vsel %vm968, %v914, -inf
      %v972 = vsel %vm968, %v963, -inf
      %v973 = vsel %vm774, %v969, -inf
      %974 = vmax.xlane.f32.xlu0 %v973
      %v975 = vpop.xlane.xlu0 %974
      %v976 = vsel %vm774, %v970, -inf
      %977 = vmax.xlane.f32.xlu0 %v976
      %v978 = vpop.xlane.xlu0 %977
      %v979 = vsel %vm774, %v971, -inf
      %980 = vmax.xlane.f32.xlu0 %v979
      %v981 = vpop.xlane.xlu0 %980
      %v982 = vsel %vm774, %v972, -inf
      %983 = vmax.xlane.f32.xlu0 %v982
      %v984 = vpop.xlane.xlu0 %983
      %v985 = vsub.f32 %v969, %v975
      %v986 = vsub.f32 %v970, %v978
      %v987 = vsub.f32 %v971, %v981
      %v988 = vsub.f32 %v972, %v984
      %v989 = vmul.f32 %v985, 1.442695
      %v990 = vpow.pop %v989
      %v991 = vmul.f32 %v986, 1.442695
      %v992 = vpow.pop %v991
      %v993 = vmul.f32 %v987, 1.442695
      %v994 = vpow.pop %v993
      %v995 = vmul.f32 %v988, 1.442695
      %v996 = vpow.pop %v995
      %v997 = vsel %vm774, %v990, 0.0
      %998 = vadd.xlane.f32.xlu0 %v997
      %v999 = vpop.xlane.xlu0 %998
      %v1000 = vsel %vm774, %v992, 0.0
      %1001 = vadd.xlane.f32.xlu0 %v1000
      %v1002 = vpop.xlane.xlu0 %1001
      %v1003 = vsel %vm774, %v994, 0.0
      %1004 = vadd.xlane.f32.xlu0 %v1003
      %v1005 = vpop.xlane.xlu0 %1004
      %v1006 = vsel %vm774, %v996, 0.0
      %1007 = vadd.xlane.f32.xlu0 %v1006
      %v1008 = vpop.xlane.xlu0 %1007
      %v1009 = vrcp.pop %v999
      %v1010 = vrcp.pop %v1002
      %v1011 = vrcp.pop %v1005
      %v1012 = vrcp.pop %v1008
      %v1013 = vmul.f32 %v990, %v1009
      %v1014 = vmul.f32 %v992, %v1010
      %v1015 = vmul.f32 %v994, %v1011
      %v1016 = vmul.f32 %v996, %v1012
      %v1017 = vpack.c.bf16 %v1013, %v1013
      %v1018 = vpack.c.bf16 %v1014, %v1014
      %v1019 = vpack.c.bf16 %v1015, %v1015
      %v1020 = vpack.c.bf16 %v1016, %v1016
      %1021 = vrot.lane.b32.xlu0 %v763, 64
      %v1022 = vpop.permute.xlu0 %1021
      %v1024 = vsel %vm774, %v1017, 0
      %vm1026 = vcmask 1043456
      %v1028 = vsel %vm1026, %v1022, 0
      %1030 = vmatprep.subr.bf16.mxu0 0
      %1031 = vmatpush1.bf16.msra.mxu0 %v1028
      %1032 = vmatprep.subr.bf16.mxu0 0
      %1033 = vmatpush1.bf16.msra.mxu0 0
      %1034 = vmatprep.subr.bf16.mxu0 0
      %1035 = vmatpush1.bf16.msra.mxu0 0
      %1036 = vmatprep.subr.bf16.mxu0 0
      %1037 = vmatpush1.bf16.msra.mxu0 0
      %1038 = vmatprep.subr.bf16.mxu0 0
      %1039 = vmatpush1.bf16.msra.mxu0 0
      %1040 = vmatprep.subr.bf16.mxu0 0
      %1041 = vmatpush1.bf16.msra.mxu0 0
      %1042 = vmatprep.subr.bf16.mxu0 0
      %1043 = vmatpush1.bf16.msra.mxu0 0
      %1044 = vmatprep.subr.bf16.mxu0 0
      %1045 = vmatpush1.bf16.msra.mxu0 0
      %1046 = vmatprep.subr.bf16.mxu0 0
      %1047 = vmatpush1.bf16.msra.mxu0 0
      %1048 = vmatprep.subr.bf16.mxu0 0
      %1049 = vmatpush1.bf16.msra.mxu0 0
      %1050 = vmatprep.subr.bf16.mxu0 0
      %1051 = vmatpush1.bf16.msra.mxu0 0
      %1052 = vmatprep.subr.bf16.mxu0 0
      %1053 = vmatpush1.bf16.msra.mxu0 0
      %1054 = vmatprep.subr.bf16.mxu0 0
      %1055 = vmatpush1.bf16.msra.mxu0 0
      %1056 = vmatprep.subr.bf16.mxu0 0
      %1057 = vmatpush1.bf16.msra.mxu0 0
      %1058 = vmatprep.subr.bf16.mxu0 0
      %1059 = vmatpush1.bf16.msra.mxu0 0
      %1060 = vmatprep.subr.bf16.mxu0 0
      %1061 = vmatpush1.bf16.msra.mxu0 0
      %1062 = vmatprep.mubr.bf16.mxu0 0
      %1063 = vmatmul.mubr.bf16.gmra.mrb[0].mxu0 %v1024
      %v1064 = vpop.f32.mrb[0].mxu0
      %v1065 = vadd.f32 0.0, %v1064
      %v1066 = vpop.f32.mrb[0].mxu0
      %v1067 = vpop.f32.mrb[0].mxu0
      %v1068 = vpop.f32.mrb[0].mxu0
      %1069 = vdwg.mxu0
      %1070 = vrot.lane.b32.xlu0 %v764, 64
      %v1071 = vpop.permute.xlu0 %1070
      %v1073 = vsel %vm774, %v1018, 0
      %v1076 = vsel %vm1026, %v1071, 0
      %1078 = vmatprep.subr.bf16.mxu0 0
      %1079 = vmatpush1.bf16.msra.mxu0 %v1076
      %1080 = vmatprep.subr.bf16.mxu0 0
      %1081 = vmatpush1.bf16.msra.mxu0 0
      %1082 = vmatprep.subr.bf16.mxu0 0
      %1083 = vmatpush1.bf16.msra.mxu0 0
      %1084 = vmatprep.subr.bf16.mxu0 0
      %1085 = vmatpush1.bf16.msra.mxu0 0
      %1086 = vmatprep.subr.bf16.mxu0 0
      %1087 = vmatpush1.bf16.msra.mxu0 0
      %1088 = vmatprep.subr.bf16.mxu0 0
      %1089 = vmatpush1.bf16.msra.mxu0 0
      %1090 = vmatprep.subr.bf16.mxu0 0
      %1091 = vmatpush1.bf16.msra.mxu0 0
      %1092 = vmatprep.subr.bf16.mxu0 0
      %1093 = vmatpush1.bf16.msra.mxu0 0
      %1094 = vmatprep.subr.bf16.mxu0 0
      %1095 = vmatpush1.bf16.msra.mxu0 0
      %1096 = vmatprep.subr.bf16.mxu0 0
      %1097 = vmatpush1.bf16.msra.mxu0 0
      %1098 = vmatprep.subr.bf16.mxu0 0
      %1099 = vmatpush1.bf16.msra.mxu0 0
      %1100 = vmatprep.subr.bf16.mxu0 0
      %1101 = vmatpush1.bf16.msra.mxu0 0
      %1102 = vmatprep.subr.bf16.mxu0 0
      %1103 = vmatpush1.bf16.msra.mxu0 0
      %1104 = vmatprep.subr.bf16.mxu0 0
      %1105 = vmatpush1.bf16.msra.mxu0 0
      %1106 = vmatprep.subr.bf16.mxu0 0
      %1107 = vmatpush1.bf16.msra.mxu0 0
      %1108 = vmatprep.subr.bf16.mxu0 0
      %1109 = vmatpush1.bf16.msra.mxu0 0
      %1110 = vmatprep.mubr.bf16.mxu0 0
      %1111 = vmatmul.mubr.bf16.gmra.mrb[0].mxu0 %v1073
      %v1112 = vpop.f32.mrb[0].mxu0
      %v1113 = vadd.f32 0.0, %v1112
      %v1114 = vpop.f32.mrb[0].mxu0
      %v1115 = vpop.f32.mrb[0].mxu0
      %v1116 = vpop.f32.mrb[0].mxu0
      %1117 = vdwg.mxu0
      %1118 = vrot.lane.b32.xlu0 %v765, 64
      %v1119 = vpop.permute.xlu0 %1118
      %v1121 = vsel %vm774, %v1019, 0
      %v1124 = vsel %vm1026, %v1119, 0
      %1126 = vmatprep.subr.bf16.mxu0 0
      %1127 = vmatpush1.bf16.msra.mxu0 %v1124
      %1128 = vmatprep.subr.bf16.mxu0 0
      %1129 = vmatpush1.bf16.msra.mxu0 0
      %1130 = vmatprep.subr.bf16.mxu0 0
      %1131 = vmatpush1.bf16.msra.mxu0 0
      %1132 = vmatprep.subr.bf16.mxu0 0
      %1133 = vmatpush1.bf16.msra.mxu0 0
      %1134 = vmatprep.subr.bf16.mxu0 0
      %1135 = vmatpush1.bf16.msra.mxu0 0
      %1136 = vmatprep.subr.bf16.mxu0 0
      %1137 = vmatpush1.bf16.msra.mxu0 0
      %1138 = vmatprep.subr.bf16.mxu0 0
      %1139 = vmatpush1.bf16.msra.mxu0 0
      %1140 = vmatprep.subr.bf16.mxu0 0
      %1141 = vmatpush1.bf16.msra.mxu0 0
      %1142 = vmatprep.subr.bf16.mxu0 0
      %1143 = vmatpush1.bf16.msra.mxu0 0
      %1144 = vmatprep.subr.bf16.mxu0 0
      %1145 = vmatpush1.bf16.msra.mxu0 0
      %1146 = vmatprep.subr.bf16.mxu0 0
      %1147 = vmatpush1.bf16.msra.mxu0 0
      %1148 = vmatprep.subr.bf16.mxu0 0
      %1149 = vmatpush1.bf16.msra.mxu0 0
      %1150 = vmatprep.subr.bf16.mxu0 0
      %1151 = vmatpush1.bf16.msra.mxu0 0
      %1152 = vmatprep.subr.bf16.mxu0 0
      %1153 = vmatpush1.bf16.msra.mxu0 0
      %1154 = vmatprep.subr.bf16.mxu0 0
      %1155 = vmatpush1.bf16.msra.mxu0 0
      %1156 = vmatprep.subr.bf16.mxu0 0
      %1157 = vmatpush1.bf16.msra.mxu0 0
      %1158 = vmatprep.mubr.bf16.mxu0 0
      %1159 = vmatmul.mubr.bf16.gmra.mrb[0].mxu0 %v1121
      %v1160 = vpop.f32.mrb[0].mxu0
      %v1161 = vadd.f32 0.0, %v1160
      %v1162 = vpop.f32.mrb[0].mxu0
      %v1163 = vpop.f32.mrb[0].mxu0
      %v1164 = vpop.f32.mrb[0].mxu0
      %1165 = vdwg.mxu0
      %1166 = vrot.lane.b32.xlu0 %v766, 64
      %v1167 = vpop.permute.xlu0 %1166
      %v1169 = vsel %vm774, %v1020, 0
      %v1172 = vsel %vm1026, %v1167, 0
      %1174 = vmatprep.subr.bf16.mxu0 0
      %1175 = vmatpush1.bf16.msra.mxu0 %v1172
      %1176 = vmatprep.subr.bf16.mxu0 0
      %1177 = vmatpush1.bf16.msra.mxu0 0
      %1178 = vmatprep.subr.bf16.mxu0 0
      %1179 = vmatpush1.bf16.msra.mxu0 0
      %1180 = vmatprep.subr.bf16.mxu0 0
      %1181 = vmatpush1.bf16.msra.mxu0 0
      %1182 = vmatprep.subr.bf16.mxu0 0
      %1183 = vmatpush1.bf16.msra.mxu0 0
      %1184 = vmatprep.subr.bf16.mxu0 0
      %1185 = vmatpush1.bf16.msra.mxu0 0
      %1186 = vmatprep.subr.bf16.mxu0 0
      %1187 = vmatpush1.bf16.msra.mxu0 0
      %1188 = vmatprep.subr.bf16.mxu0 0
      %1189 = vmatpush1.bf16.msra.mxu0 0
      %1190 = vmatprep.subr.bf16.mxu0 0
      %1191 = vmatpush1.bf16.msra.mxu0 0
      %1192 = vmatprep.subr.bf16.mxu0 0
      %1193 = vmatpush1.bf16.msra.mxu0 0
      %1194 = vmatprep.subr.bf16.mxu0 0
      %1195 = vmatpush1.bf16.msra.mxu0 0
      %1196 = vmatprep.subr.bf16.mxu0 0
      %1197 = vmatpush1.bf16.msra.mxu0 0
      %1198 = vmatprep.subr.bf16.mxu0 0
      %1199 = vmatpush1.bf16.msra.mxu0 0
      %1200 = vmatprep.subr.bf16.mxu0 0
      %1201 = vmatpush1.bf16.msra.mxu0 0
      %1202 = vmatprep.subr.bf16.mxu0 0
      %1203 = vmatpush1.bf16.msra.mxu0 0
      %1204 = vmatprep.subr.bf16.mxu0 0
      %1205 = vmatpush1.bf16.msra.mxu0 0
      %1206 = vmatprep.mubr.bf16.mxu0 0
      %1207 = vmatmul.mubr.bf16.gmra.mrb[0].mxu0 %v1169
      %v1208 = vpop.f32.mrb[0].mxu0
      %v1209 = vadd.f32 0.0, %v1208
      %v1210 = vpop.f32.mrb[0].mxu0
      %v1211 = vpop.f32.mrb[0].mxu0
      %v1212 = vpop.f32.mrb[0].mxu0
      %1213 = vdwg.mxu0
      %1215 = vrot.lane.b32.xlu0 %v1113, 8
      %v1216 = vpop.permute.xlu0 %1215
      %1219 = vrot.lane.b32.xlu0 %v1161, 16
      %v1220 = vpop.permute.xlu0 %1219
      %1223 = vrot.lane.b32.xlu0 %v1209, 24
      %v1224 = vpop.permute.xlu0 %1223
      %v1226 = vsel %vm774, %v1065, %v1216
      %vm1227 = vcmask 130048
      %v1228 = vsel %vm1227, %v1226, %v1220
      %vm1229 = vcmask 195584
      %v1230 = vsel %vm1229, %v1228, %v1224
      %v1231 = vpack.c.bf16 %v1230, %v1230
      %v1232 = vld [vmem:[%s623] sm:$0xf]
      %v1233 = vld [vmem:[%s623 + $0x4] sm:$0xf]
      %v1234 = vld [vmem:[%s623 + $0x8] sm:$0xf]
      %v1235 = vld [vmem:[%s623 + $0xc] sm:$0xf]
      %v1236 = vld [vmem:[%s626] sm:$0x1]
      %v1238 = vlaneseq
      %v1239 = vshrl.u32 %v1238, 7
      %v1240 = vsub.s32 0, %v1239
      %v1241 = vrot.slane %v1236, %v1240
      %v1247 = vunpack.c.l.b16 %v1232
      %v1248 = vunpack.c.l.b16 %v1233
      %v1249 = vunpack.c.l.b16 %v1234
      %v1250 = vunpack.c.l.b16 %v1235
      %v1251 = vpack.c.b16 %v1248, %v1247
      %v1252 = vpack.c.b16 %v1250, %v1249
      %v1256 = vsel %vm664, %v1231, 0
      %1258 = vmatprep.subr.bf16.mxu0 0
      %1259 = vmatpush1.bf16.msra.mxu0 %v1251
      %1260 = vmatprep.subr.bf16.mxu0 0
      %1261 = vmatpush1.bf16.msra.mxu0 %v1252
      %1262 = vmatprep.subr.bf16.mxu0 0
      %1263 = vmatpush1.bf16.msra.mxu0 0
      %1264 = vmatprep.subr.bf16.mxu0 0
      %1265 = vmatpush1.bf16.msra.mxu0 0
      %1266 = vmatprep.subr.bf16.mxu0 0
      %1267 = vmatpush1.bf16.msra.mxu0 0
      %1268 = vmatprep.subr.bf16.mxu0 0
      %1269 = vmatpush1.bf16.msra.mxu0 0
      %1270 = vmatprep.subr.bf16.mxu0 0
      %1271 = vmatpush1.bf16.msra.mxu0 0
      %1272 = vmatprep.subr.bf16.mxu0 0
      %1273 = vmatpush1.bf16.msra.mxu0 0
      %1274 = vmatprep.subr.bf16.mxu0 0
      %1275 = vmatpush1.bf16.msra.mxu0 0
      %1276 = vmatprep.subr.bf16.mxu0 0
      %1277 = vmatpush1.bf16.msra.mxu0 0
      %1278 = vmatprep.subr.bf16.mxu0 0
      %1279 = vmatpush1.bf16.msra.mxu0 0
      %1280 = vmatprep.subr.bf16.mxu0 0
      %1281 = vmatpush1.bf16.msra.mxu0 0
      %1282 = vmatprep.subr.bf16.mxu0 0
      %1283 = vmatpush1.bf16.msra.mxu0 0
      %1284 = vmatprep.subr.bf16.mxu0 0
      %1285 = vmatpush1.bf16.msra.mxu0 0
      %1286 = vmatprep.subr.bf16.mxu0 0
      %1287 = vmatpush1.bf16.msra.mxu0 0
      %1288 = vmatprep.subr.bf16.mxu0 0
      %1289 = vmatpush1.bf16.msra.mxu0 0
      %1290 = vmatprep.mubr.bf16.mxu0 0
      %1291 = vmatmul.mubr.bf16.gmra.mrb[0].mxu0 %v1256
      %v1292 = vpop.f32.mrb[0].mxu0
      %v1293 = vadd.f32 %v1241, %v1292
      %v1294 = vpop.f32.mrb[0].mxu0
      %v1295 = vpop.f32.mrb[0].mxu0
      %v1296 = vpop.f32.mrb[0].mxu0
      %1297 = vdwg.mxu0
      %v1298 = vadd.f32 %v661, %v1293
      %v1299 = vld [vmem:[%s629] sm:$0x1]
      %v1300 = vld [vmem:[%s632] sm:$0x1]
      %v1301 = vsel %vm664, %v1298, 0.0
      %1302 = vadd.xlane.f32.xlu0 %v1301
      %v1303 = vpop.xlane.xlu0 %1302
      %v1304 = vmul.f32 %v1303, %v668
      %v1305 = vsub.f32 %v1298, %v1304
      %v1306 = vmul.f32 %v1305, %v1305
      %v1307 = vsel %vm664, %v1306, 0.0
      %1308 = vadd.xlane.f32.xlu0 %v1307
      %v1309 = vpop.xlane.xlu0 %1308
      %v1310 = vmul.f32 %v1309, %v668
      %v1311 = vadd.f32 %v1310, 1e-05
      %v1312 = vrsqrt.pop %v1311
      %v1313 = vmul.f32 %v1305, %v1312
      %v1315 = vlaneseq
      %v1316 = vshrl.u32 %v1315, 7
      %v1317 = vsub.s32 0, %v1316
      %v1318 = vrot.slane %v1299, %v1317
      %v1320 = vmul.f32 %v1313, %v1318
      %v1322 = vlaneseq
      %v1323 = vshrl.u32 %v1322, 7
      %v1324 = vsub.s32 0, %v1323
      %v1325 = vrot.slane %v1300, %v1324
      %v1327 = vadd.f32 %v1320, %v1325
      %v1328 = vpack.c.bf16 %v1327, %v1327
      %v1329 = vld [vmem:[%s637] sm:$0xf]
      %v1330 = vld [vmem:[%s637 + $0x4] sm:$0xf]
      %v1331 = vld [vmem:[%s637 + $0x8] sm:$0xf]
      %v1332 = vld [vmem:[%s637 + $0xc] sm:$0xf]
      %v1333 = vld [vmem:[%s640] sm:$0x1]
      %v1335 = vlaneseq
      %v1336 = vshrl.u32 %v1335, 7
      %v1337 = vsub.s32 0, %v1336
      %v1338 = vrot.slane %v1333, %v1337
      %v1344 = vunpack.c.l.b16 %v1329
      %v1345 = vunpack.c.l.b16 %v1330
      %v1346 = vunpack.c.l.b16 %v1331
      %v1347 = vunpack.c.l.b16 %v1332
      %v1348 = vpack.c.b16 %v1345, %v1344
      %v1349 = vpack.c.b16 %v1347, %v1346
      %v1353 = vsel %vm664, %v1328, 0
      %1355 = vmatprep.subr.bf16.mxu0 0
      %1356 = vmatpush1.bf16.msra.mxu0 %v1348
      %1357 = vmatprep.subr.bf16.mxu0 0
      %1358 = vmatpush1.bf16.msra.mxu0 %v1349
      %1359 = vmatprep.subr.bf16.mxu0 0
      %1360 = vmatpush1.bf16.msra.mxu0 0
      %1361 = vmatprep.subr.bf16.mxu0 0
      %1362 = vmatpush1.bf16.msra.mxu0 0
      %1363 = vmatprep.subr.bf16.mxu0 0
      %1364 = vmatpush1.bf16.msra.mxu0 0
      %1365 = vmatprep.subr.bf16.mxu0 0
      %1366 = vmatpush1.bf16.msra.mxu0 0
      %1367 = vmatprep.subr.bf16.mxu0 0
      %1368 = vmatpush1.bf16.msra.mxu0 0
      %1369 = vmatprep.subr.bf16.mxu0 0
      %1370 = vmatpush1.bf16.msra.mxu0 0
      %1371 = vmatprep.subr.bf16.mxu0 0
      %1372 = vmatpush1.bf16.msra.mxu0 0
      %1373 = vmatprep.subr.bf16.mxu0 0
      %1374 = vmatpush1.bf16.msra.mxu0 0
      %1375 = vmatprep.subr.bf16.mxu0 0
      %1376 = vmatpush1.bf16.msra.mxu0 0
      %1377 = vmatprep.subr.bf16.mxu0 0
      %1378 = vmatpush1.bf16.msra.mxu0 0
      %1379 = vmatprep.subr.bf16.mxu0 0
      %1380 = vmatpush1.bf16.msra.mxu0 0
      %1381 = vmatprep.subr.bf16.mxu0 0
      %1382 = vmatpush1.bf16.msra.mxu0 0
      %1383 = vmatprep.subr.bf16.mxu0 0
      %1384 = vmatpush1.bf16.msra.mxu0 0
      %1385 = vmatprep.subr.bf16.mxu0 0
      %1386 = vmatpush1.bf16.msra.mxu0 0
      %1387 = vmatprep.mubr.bf16.mxu0 0
      %1388 = vmatmul.mubr.bf16.gmra.mrb[0].mxu0 %v1353
      %v1389 = vpop.f32.mrb[0].mxu0
      %v1390 = vadd.f32 %v1338, %v1389
      %v1391 = vpop.f32.mrb[0].mxu0
      %v1392 = vpop.f32.mrb[0].mxu0
      %v1393 = vpop.f32.mrb[0].mxu0
      %1394 = vdwg.mxu0
      %v1395 = vmax.f32 %v1390, 0.0
      %v1396 = vpack.c.bf16 %v1395, %v1395
      %v1397 = vld [vmem:[%s645] sm:$0xf]
      %v1398 = vld [vmem:[%s645 + $0x4] sm:$0xf]
      %v1399 = vld [vmem:[%s645 + $0x8] sm:$0xf]
      %v1400 = vld [vmem:[%s645 + $0xc] sm:$0xf]
      %v1401 = vld [vmem:[%s645 + $0x10] sm:$0xf]
      %v1402 = vld [vmem:[%s645 + $0x14] sm:$0xf]
      %v1403 = vld [vmem:[%s645 + $0x18] sm:$0xf]
      %v1404 = vld [vmem:[%s645 + $0x1c] sm:$0xf]
      %v1405 = vld [vmem:[%s645 + $0x20] sm:$0xf]
      %v1406 = vld [vmem:[%s645 + $0x24] sm:$0xf]
      %v1407 = vld [vmem:[%s645 + $0x28] sm:$0xf]
      %v1408 = vld [vmem:[%s645 + $0x2c] sm:$0xf]
      %v1409 = vld [vmem:[%s645 + $0x30] sm:$0xf]
      %v1410 = vld [vmem:[%s645 + $0x34] sm:$0xf]
      %v1411 = vld [vmem:[%s645 + $0x38] sm:$0xf]
      %v1412 = vld [vmem:[%s645 + $0x3c] sm:$0xf]
      %v1413 = vld [vmem:[%s648] sm:$0x1]
      %v1415 = vlaneseq
      %v1416 = vshrl.u32 %v1415, 7
      %v1417 = vsub.s32 0, %v1416
      %v1418 = vrot.slane %v1413, %v1417
      %v1436 = vunpack.c.l.b16 %v1397
      %v1437 = vunpack.c.l.b16 %v1398
      %v1438 = vunpack.c.l.b16 %v1399
      %v1439 = vunpack.c.l.b16 %v1400
      %v1440 = vunpack.c.l.b16 %v1401
      %v1441 = vunpack.c.l.b16 %v1402
      %v1442 = vunpack.c.l.b16 %v1403
      %v1443 = vunpack.c.l.b16 %v1404
      %v1444 = vunpack.c.l.b16 %v1405
      %v1445 = vunpack.c.l.b16 %v1406
      %v1446 = vunpack.c.l.b16 %v1407
      %v1447 = vunpack.c.l.b16 %v1408
      %v1448 = vunpack.c.l.b16 %v1409
      %v1449 = vunpack.c.l.b16 %v1410
      %v1450 = vunpack.c.l.b16 %v1411
      %v1451 = vunpack.c.l.b16 %v1412
      %v1452 = vpack.c.b16 %v1437, %v1436
      %v1453 = vpack.c.b16 %v1439, %v1438
      %v1454 = vpack.c.b16 %v1441, %v1440
      %v1455 = vpack.c.b16 %v1443, %v1442
      %v1456 = vpack.c.b16 %v1445, %v1444
      %v1457 = vpack.c.b16 %v1447, %v1446
      %v1458 = vpack.c.b16 %v1449, %v1448
      %v1459 = vpack.c.b16 %v1451, %v1450
      %1468 = vmatprep.subr.bf16.mxu0 0
      %1469 = vmatpush1.bf16.msra.mxu0 %v1452
      %1470 = vmatprep.subr.bf16.mxu0 0
      %1471 = vmatpush1.bf16.msra.mxu0 %v1453
      %1472 = vmatprep.subr.bf16.mxu0 0
      %1473 = vmatpush1.bf16.msra.mxu0 %v1454
      %1474 = vmatprep.subr.bf16.mxu0 0
      %1475 = vmatpush1.bf16.msra.mxu0 %v1455
      %1476 = vmatprep.subr.bf16.mxu0 0
      %1477 = vmatpush1.bf16.msra.mxu0 %v1456
      %1478 = vmatprep.subr.bf16.mxu0 0
      %1479 = vmatpush1.bf16.msra.mxu0 %v1457
      %1480 = vmatprep.subr.bf16.mxu0 0
      %1481 = vmatpush1.bf16.msra.mxu0 %v1458
      %1482 = vmatprep.subr.bf16.mxu0 0
      %1483 = vmatpush1.bf16.msra.mxu0 %v1459
      %1484 = vmatprep.subr.bf16.mxu0 0
      %1485 = vmatpush1.bf16.msra.mxu0 0
      %1486 = vmatprep.subr.bf16.mxu0 0
      %1487 = vmatpush1.bf16.msra.mxu0 0
      %1488 = vmatprep.subr.bf16.mxu0 0
      %1489 = vmatpush1.bf16.msra.mxu0 0
      %1490 = vmatprep.subr.bf16.mxu0 0
      %1491 = vmatpush1.bf16.msra.mxu0 0
      %1492 = vmatprep.subr.bf16.mxu0 0
      %1493 = vmatpush1.bf16.msra.mxu0 0
      %1494 = vmatprep.subr.bf16.mxu0 0
      %1495 = vmatpush1.bf16.msra.mxu0 0
      %1496 = vmatprep.subr.bf16.mxu0 0
      %1497 = vmatpush1.bf16.msra.mxu0 0
      %1498 = vmatprep.subr.bf16.mxu0 0
      %1499 = vmatpush1.bf16.msra.mxu0 0
      %1500 = vmatprep.mubr.bf16.mxu0 0
      %1501 = vmatmul.mubr.bf16.gmra.mrb[0].mxu0 %v1396
      %v1502 = vpop.f32.mrb[0].mxu0
      %v1503 = vadd.f32 %v1418, %v1502
      %v1504 = vpop.f32.mrb[0].mxu0
      %v1505 = vpop.f32.mrb[0].mxu0
      %v1506 = vpop.f32.mrb[0].mxu0
      %1507 = vdwg.mxu0
      %v1508 = vadd.f32 %v1298, %v1503
      %1509 = vst.msk [vmem:[#allocation2] sm:$0xff] %vm664, %v1508
      %p1510 = scmp.eq.s32.totalorder %s30, 1
      // Predicated region
      $region81: #{transformer_forward.2} parent=75 // pred_check
        %p1511 = pneg %p1510
      $region82: #{transformer_forward.2} parent=75 // pred_check_branch
        %1513 = sbr.rel (%p1511) target = $region84
      $region83: #{transformer_forward.2} parent=75 // pred_region
        %v1514 = vld [vmem:[%s12] sm:$0x1]
        %v1515 = vld [vmem:[%s13] sm:$0x1]
        %v1516 = vsel %vm664, %v1508, 0.0
        %1517 = vadd.xlane.f32.xlu0 %v1516
        %v1518 = vpop.xlane.xlu0 %1517
        %v1519 = vmul.f32 %v1518, %v668
        %v1520 = vsub.f32 %v1508, %v1519
        %v1521 = vmul.f32 %v1520, %v1520
        %v1522 = vsel %vm664, %v1521, 0.0
        %1523 = vadd.xlane.f32.xlu0 %v1522
        %v1524 = vpop.xlane.xlu0 %1523
        %v1525 = vmul.f32 %v1524, %v668
        %v1526 = vadd.f32 %v1525, 1e-05
        %v1527 = vrsqrt.pop %v1526
        %v1528 = vmul.f32 %v1520, %v1527
        %v1530 = vlaneseq
        %v1531 = vshrl.u32 %v1530, 7
        %v1532 = vsub.s32 0, %v1531
        %v1533 = vrot.slane %v1514, %v1532
        %v1535 = vmul.f32 %v1528, %v1533
        %v1537 = vlaneseq
        %v1538 = vshrl.u32 %v1537, 7
        %v1539 = vsub.s32 0, %v1538
        %v1540 = vrot.slane %v1515, %v1539
        %v1542 = vadd.f32 %v1535, %v1540
        %v1543 = vpack.c.bf16 %v1542, %v1542
        %vm1544 = vcmask 257024
        %1545 = vst.msk [vmem:[%s652] sm:$0xf] %vm1544, %v1543
      $region84: #{transformer_forward.2} parent=75 // pred_fallthru
        _
      %p1546 = scmp.lt.s32.totalorder %s29, 1
      %s1547 = scalar_select %p1546, %s29, 1
      %s1548 = smul.addr %s1547, 4
      %s1549 = scalar_lea.vmem %s14, %s1548
      // Predicated region
      $region85: #{transformer_forward.2} parent=75 // pred_check
        %p1550 = pneg %p409
      $region86: #{transformer_forward.2} parent=75 // pred_check_branch
        %1552 = sbr.rel (%p1550) target = $region88
      $region87: #{transformer_forward.2} parent=75 // pred_region
        _
      $region88: #{transformer_forward.2} parent=75 // pred_fallthru
        _
    $region76: #{transformer_forward.2} parent=5 // pred_fallthru
      _
    %p1553 = scmp.le.s32.totalorder 2, %s20
    // Predicated region
    $region89: #{transformer_forward.2} parent=5 // pred_check
      %p1554 = pneg %p1553
    $region90: #{transformer_forward.2} parent=5 // pred_check_branch
      %1556 = sbr.rel (%p1554) target = $region92
    $region91: #{transformer_forward.2} parent=5 // pred_region
      %s1557 = ssub.s32 %s20, 2
      // Predicated region
      $region93: #{transformer_forward.2} parent=91 // pred_check
        %p1558 = pneg %p415
      $region94: #{transformer_forward.2} parent=91 // pred_check_branch
        %1560 = sbr.rel (%p1558) target = $region96
      $region95: #{transformer_forward.2} parent=91 // pred_region
        %p1561 = scmp.lt.s32.totalorder %s31, 1
        %s1562 = scalar_select %p1561, %s31, 1
        %s1563 = smul.addr %s1562, 4
        %s1564 = scalar_lea.vmem %s14, %s1563
      $region96: #{transformer_forward.2} parent=91 // pred_fallthru
        _
    $region92: #{transformer_forward.2} parent=5 // pred_fallthru
      _
  $region6: #{transformer_forward.2} parent=0 // loop_footer
    %s24 = sadd.s32 1, %s20
  $region7: #{transformer_forward.2} parent=0 // loop_footer_branch
    %19 = sbr.rel target = $region3
  $region8: #{transformer_forward.2} parent=0 // loop_exit
    _

</llo_original>
